<compile_context>
chip_gen: v5e
topology: v5e:2x2
jax: 0.10.0
libtpu: 0.0.40
codegen_flags: <defaults>
</compile_context>

<pallas_src>
import functools

import jax
import jax.numpy as jnp
from jax.experimental import pallas as pl
from jax.experimental.pallas import tpu as pltpu

# MXU operand / intermediate-activation dtype (accumulation, LN stats, softmax and the
# residual stream always stay f32).  Set to jnp.float32 for full-precision parity.
MXU_DTYPE = jnp.bfloat16

_GEMM_VMEM_LIMIT = 48 * 1024 * 1024   # explicit scoped-VMEM limit (v5e default is 16 MiB;
                                      # v7x physical is 64 MiB, so stay below that)
_GEMM_VMEM_BUDGET = 40 * 1024 * 1024  # target for the double-buffered tile set


# ------------------------------ tiling helpers ------------------------------

def _round_up(x, m):
    return ((x + m - 1) // m) * m


def _row_plan(M):
    """Pad M up to a clean row-tile granule and return (padded_M, row_tile)."""
    if M >= 4096:
        g = 512
    elif M >= 1024:
        g = 256
    elif M >= 256:
        g = 128
    else:
        g = _round_up(M, 8)       # small M: single full-height tile
    Mp = _round_up(M, g)
    return Mp, min(g, Mp)


def _col_tile(N, fits):
    """Full N preferred; otherwise the largest multiple-of-128 divisor passing `fits`."""
    if fits(N):
        return N
    tn = (N // 128) * 128
    while tn >= 128:
        if N % tn == 0 and fits(tn):
            return tn
        tn -= 128
    return N


def _pad_rows(x, Mp):
    M = x.shape[0]
    if Mp == M:
        return x
    return jnp.pad(x, ((0, Mp - M), (0, 0)))


# ----------------------------- Pallas kernels ------------------------------

def _patch_embed_kernel(x_ref, w_ref, b_ref, pos_ref, o_ref, *, mxu_dtype):
    # (NP, C*P*P) @ (C*P*P, D) + bias + pos_embed[1:]   (pos add fused in epilogue)
    y = jnp.dot(x_ref[0].astype(mxu_dtype), w_ref[...].astype(mxu_dtype),
                preferred_element_type=jnp.float32)
    o_ref[0] = (y + b_ref[...] + pos_ref[...]).astype(o_ref.dtype)


def patch_embed_pallas(patches3, w, b, pos_patches):
    """patches3: (B, NP, C*P*P); w: (C*P*P, D); pos_patches: (NP, D) -> (B, NP, D) f32."""
    B, NP, K = patches3.shape
    Kw, D = w.shape
    assert K == Kw
    kernel = functools.partial(_patch_embed_kernel, mxu_dtype=MXU_DTYPE)
    # TODO(synk): for v7x (2 TensorCores) with tiny B, add a second parallel grid axis
    # over patch-row tiles; kept grid=(B,) to preserve the fused pos_embed add.
    return pl.pallas_call(
        kernel,
        out_shape=jax.ShapeDtypeStruct((B, NP, D), jnp.float32),
        grid=(B,),
        in_specs=[
            pl.BlockSpec((1, NP, K), lambda i: (i, 0, 0)),
            pl.BlockSpec((K, D), lambda i: (0, 0)),
            pl.BlockSpec((1, D), lambda i: (0, 0)),
            pl.BlockSpec((NP, D), lambda i: (0, 0)),
        ],
        out_specs=pl.BlockSpec((1, NP, D), lambda i: (i, 0, 0)),
        compiler_params=pltpu.CompilerParams(dimension_semantics=("parallel",)),
    )(patches3, w, b.reshape(1, D), pos_patches)


def _ln_matmul_kernel(*refs, eps, activation, has_bias, mxu_dtype):
    if has_bias:
        x_ref, g_ref, beta_ref, w_ref, bias_ref, o_ref, xn_ref = refs
    else:
        x_ref, g_ref, beta_ref, w_ref, o_ref, xn_ref = refs
        bias_ref = None

    # LayerNorm (f32 stats) computed once per row tile and cached as the bf16 MXU
    # operand; reused for every N tile of the same row tile (N axis is "arbitrary",
    # so all j steps of a row tile run on the same core, j == 0 first).
    @pl.when(pl.program_id(1) == 0)
    def _():
        x = x_ref[...].astype(jnp.float32)
        mean = jnp.mean(x, axis=-1, keepdims=True)
        xc = x - mean
        var = jnp.mean(xc * xc, axis=-1, keepdims=True)   # population variance (torch LN)
        xn = xc * jax.lax.rsqrt(var + eps) * g_ref[...] + beta_ref[...]
        xn_ref[...] = xn.astype(mxu_dtype)

    y = jnp.dot(xn_ref[...], w_ref[...].astype(mxu_dtype),
                preferred_element_type=jnp.float32)
    if bias_ref is not None:
        y = y + bias_ref[...]
    if activation == "gelu":
        # TODO(synk): PyTorch nn.GELU() defaults to the exact erf-based GELU; the tanh
        # approximation is used here (guaranteed Mosaic lowering), ~1e-3 max deviation.
        c = jnp.float32(0.7978845608028654)  # sqrt(2/pi)
        y = 0.5 * y * (1.0 + jnp.tanh(c * (y + 0.044715 * y * y * y)))
    o_ref[...] = y.astype(o_ref.dtype)


def ln_matmul_pallas(x2d, gamma, beta, w, bias=None, activation=None,
                     eps=1e-6, out_dtype=MXU_DTYPE):
    """y = act(LayerNorm(x2d) @ w + bias); K kept whole (needed for LN stats)."""
    M, K = x2d.shape
    Kw, N = w.shape
    assert K == Kw
    Mp, tm = _row_plan(M)
    xp = _pad_rows(x2d, Mp)
    xb, wb, ob = xp.dtype.itemsize, w.dtype.itemsize, jnp.dtype(out_dtype).itemsize

    def fits(tn):
        per_step = tm * K * xb + K * tn * wb + tm * tn * ob + tn * 8
        fixed = tm * K * jnp.dtype(MXU_DTYPE).itemsize + 4 * K * 8
        return 2 * per_step + fixed <= _GEMM_VMEM_BUDGET

    tn = _col_tile(N, fits)
    grid = (Mp // tm, N // tn)

    in_specs = [
        pl.BlockSpec((tm, K), lambda i, j: (i, 0)),
        pl.BlockSpec((1, K), lambda i, j: (0, 0)),
        pl.BlockSpec((1, K), lambda i, j: (0, 0)),
        pl.BlockSpec((K, tn), lambda i, j: (0, j)),
    ]
    args = [xp, gamma.reshape(1, K), beta.reshape(1, K), w]
    if bias is not None:
        in_specs.append(pl.BlockSpec((1, tn), lambda i, j: (0, j)))
        args.append(bias.reshape(1, N))

    kernel = functools.partial(_ln_matmul_kernel, eps=eps, activation=activation,
                               has_bias=bias is not None, mxu_dtype=MXU_DTYPE)
    out = pl.pallas_call(
        kernel,
        out_shape=jax.ShapeDtypeStruct((Mp, N), out_dtype),
        grid=grid,
        in_specs=in_specs,
        out_specs=pl.BlockSpec((tm, tn), lambda i, j: (i, j)),
        scratch_shapes=[pltpu.VMEM((tm, K), MXU_DTYPE)],
        compiler_params=pltpu.CompilerParams(
            dimension_semantics=("parallel", "arbitrary"),
            vmem_limit_bytes=_GEMM_VMEM_LIMIT),
    )(*args)
    return out[:M] if Mp != M else out


def _matmul_residual_kernel(x_ref, w_ref, b_ref, r_ref, o_ref, acc_ref, *, mxu_dtype):
    @pl.when(pl.program_id(2) == 0)
    def _():
        acc_ref[...] = jnp.zeros_like(acc_ref)

    acc_ref[...] += jnp.dot(x_ref[...].astype(mxu_dtype), w_ref[...].astype(mxu_dtype),
                            preferred_element_type=jnp.float32)

    @pl.when(pl.program_id(2) == pl.num_programs(2) - 1)
    def _():
        # bias + residual fused in the epilogue; residual stream stays f32
        o_ref[...] = (acc_ref[...] + b_ref[...] + r_ref[...].astype(jnp.float32)
                      ).astype(o_ref.dtype)


def matmul_residual_pallas(x2d, w, bias, residual):
    """y = x2d @ w + bias + residual, tiled over (M, N, K) with f32 accumulator."""
    M, K = x2d.shape
    Kw, N = w.shape
    assert K == Kw and residual.shape == (M, N)
    Mp, tm = _row_plan(M)
    xp = _pad_rows(x2d, Mp)
    rp = _pad_rows(residual, Mp)
    xb, wb = xp.dtype.itemsize, w.dtype.itemsize

    def fits(tn, tk):
        per_step = tm * tk * xb + tk * tn * wb + tn * 8 + tm * tn * 4 + tm * tn * 4
        fixed = tm * tn * 4   # f32 accumulator scratch
        return 2 * per_step + fixed <= _GEMM_VMEM_BUDGET

    tn = _col_tile(N, lambda t: fits(t, min(K, 512)))
    tk = _col_tile(K, lambda t: fits(tn, t))
    grid = (Mp // tm, N // tn, K // tk)

    kernel = functools.partial(_matmul_residual_kernel, mxu_dtype=MXU_DTYPE)
    out = pl.pallas_call(
        kernel,
        out_shape=jax.ShapeDtypeStruct((Mp, N), jnp.float32),
        grid=grid,
        in_specs=[
            pl.BlockSpec((tm, tk), lambda i, j, k: (i, k)),
            pl.BlockSpec((tk, tn), lambda i, j, k: (k, j)),
            pl.BlockSpec((1, tn), lambda i, j, k: (0, j)),
            pl.BlockSpec((tm, tn), lambda i, j, k: (i, j)),
        ],
        out_specs=pl.BlockSpec((tm, tn), lambda i, j, k: (i, j)),
        scratch_shapes=[pltpu.VMEM((tm, tn), jnp.float32)],
        compiler_params=pltpu.CompilerParams(
            dimension_semantics=("parallel", "parallel", "arbitrary"),
            vmem_limit_bytes=_GEMM_VMEM_LIMIT),
    )(xp, w, bias.reshape(1, N), rp)
    return out[:M] if Mp != M else out


def _l2_attn_kernel(qkv_ref, o_ref, *, num_heads, head_dim, scale, mxu_dtype):
    D = num_heads * head_dim
    for h in range(num_heads):
        q = qkv_ref[0, :, h * head_dim:(h + 1) * head_dim]                    # (S, Dh)
        k = qkv_ref[0, :, D + h * head_dim:D + (h + 1) * head_dim]            # (S, Dh)
        v = qkv_ref[0, :, 2 * D + h * head_dim:2 * D + (h + 1) * head_dim]    # (S, Dh)
        # q @ k^T without materializing k.T: contract head_dim axes directly.
        qk = jax.lax.dot_general(
            q.astype(mxu_dtype), k.astype(mxu_dtype),
            dimension_numbers=(((1,), (1,)), ((), ())),
            preferred_element_type=jnp.float32)                               # (S, S)
        kf = k.astype(jnp.float32)
        k_sq = jnp.sum(kf * kf, axis=-1, keepdims=True)                       # (S, 1)
        # -||q_i - k_j||^2 = 2 q.k - |q|^2 - |k|^2 ; the |q|^2 term is constant per row
        # and cancels in the softmax (row-max subtraction handles stability), so drop it.
        scores = (2.0 * qk - k_sq.T) * scale
        scores = scores - jnp.max(scores, axis=-1, keepdims=True)
        p = jnp.exp(scores)
        p = p * pl.reciprocal(jnp.sum(p, axis=-1, keepdims=True), approx=True)
        out_h = jnp.dot(p.astype(mxu_dtype), v.astype(mxu_dtype),
                        preferred_element_type=jnp.float32)                   # (S, Dh)
        # write straight into the lane-dense (1, S, D) output block (no concatenate)
        o_ref[0, :, h * head_dim:(h + 1) * head_dim] = out_h.astype(o_ref.dtype)


def l2_attention_pallas(qkv3, *, num_heads, head_dim, scale, out_dtype=MXU_DTYPE):
    """qkv3: (B, S, 3D) -> (B, S, D); one grid step per batch, all heads inside."""
    B, S, threeD = qkv3.shape
    D = num_heads * head_dim
    assert threeD == 3 * D
    kernel = functools.partial(_l2_attn_kernel, num_heads=num_heads,
                               head_dim=head_dim, scale=scale, mxu_dtype=MXU_DTYPE)
    # TODO(synk): for v7x (2 TensorCores) with tiny B, a (B, heads) grid would balance
    # cores better but requires XLA-side head splitting; grid=(B,) keeps lane-dense I/O.
    return pl.pallas_call(
        kernel,
        out_shape=jax.ShapeDtypeStruct((B, S, D), out_dtype),
        grid=(B,),
        in_specs=[pl.BlockSpec((1, S, threeD), lambda b: (b, 0, 0))],
        out_specs=pl.BlockSpec((1, S, D), lambda b: (b, 0, 0)),
        compiler_params=pltpu.CompilerParams(dimension_semantics=("parallel",)),
    )(qkv3)


# ----------------------------- parameter init ------------------------------

def init_params(key, *, in_chans, patch, embed_dim, depth, mlp_ratio,
                num_classes, num_patches):
    keys = iter(jax.random.split(key, 4 + 4 * depth))

    def nrm(shape, std=0.02, dtype=jnp.float32):
        return (std * jax.random.normal(next(keys), shape, dtype=jnp.float32)).astype(dtype)

    hidden = int(embed_dim * mlp_ratio)
    pd = in_chans * patch * patch
    params = {
        # Conv2d(kernel=stride=patch) expressed as a (C*P*P, D) matmul weight.
        "patch_w": nrm((pd, embed_dim), dtype=MXU_DTYPE),
        "patch_b": jnp.zeros((embed_dim,), jnp.float32),
        "cls_token": jnp.zeros((1, 1, embed_dim), jnp.float32),
        "pos_embed": nrm((1, num_patches + 1, embed_dim)),
        "norm_g": jnp.ones((embed_dim,), jnp.float32),
        "norm_b": jnp.zeros((embed_dim,), jnp.float32),
        "head_w": nrm((embed_dim, num_classes)),
        "head_b": jnp.zeros((num_classes,), jnp.float32),
        "blocks": [],
    }
    for _ in range(depth):
        params["blocks"].append({
            "ln1_g": jnp.ones((embed_dim,), jnp.float32),
            "ln1_b": jnp.zeros((embed_dim,), jnp.float32),
            "qkv_w": nrm((embed_dim, 3 * embed_dim), dtype=MXU_DTYPE),  # no bias (L2Attention)
            "proj_w": nrm((embed_dim, embed_dim), dtype=MXU_DTYPE),
            "proj_b": jnp.zeros((embed_dim,), jnp.float32),
            "ln2_g": jnp.ones((embed_dim,), jnp.float32),
            "ln2_b": jnp.zeros((embed_dim,), jnp.float32),
            "fc1_w": nrm((embed_dim, hidden), dtype=MXU_DTYPE),
            "fc1_b": jnp.zeros((hidden,), jnp.float32),
            "fc2_w": nrm((hidden, embed_dim), dtype=MXU_DTYPE),
            "fc2_b": jnp.zeros((embed_dim,), jnp.float32),
        })
    return params


# ------------------------------- forward -----------------------------------

def vit_forward(params, x, *, patch, num_heads):
    B, C, H, W = x.shape
    P = patch
    GH, GW = H // P, W // P
    NP = GH * GW
    D = params["patch_w"].shape[1]
    S = NP + 1
    Dh = D // num_heads
    scale = float(Dh) ** -0.5

    # Patch embed: Conv2d(k=s=P) == per-patch flatten (c, i, j) + matmul; pos_embed[1:]
    # add fused into the kernel epilogue.
    patches = (x.reshape(B, C, GH, P, GW, P)
                 .transpose(0, 2, 4, 1, 3, 5)
                 .reshape(B, NP, C * P * P))
    pos = params["pos_embed"]
    tok = patch_embed_pallas(patches, params["patch_w"], params["patch_b"], pos[0, 1:, :])

    # cls token row (tiny): cls + pos_embed[:, 0]   (pos_drop p=0 -> identity)
    cls = jnp.broadcast_to(params["cls_token"] + pos[:, 0:1, :], (B, 1, D))
    xseq = jnp.concatenate([cls, tok], axis=1)              # (B, S, D) f32 residual stream

    for blk in params["blocks"]:
        # ---- attention branch: x = x + proj(attn(norm1(x)))  (ls1/drop_path1 = id) ----
        x2 = xseq.reshape(B * S, D)
        qkv = ln_matmul_pallas(x2, blk["ln1_g"], blk["ln1_b"], blk["qkv_w"])     # bf16, fused LN+qkv
        a = l2_attention_pallas(qkv.reshape(B, S, 3 * D),
                                num_heads=num_heads, head_dim=Dh, scale=scale)   # bf16 (B, S, D)
        xseq = matmul_residual_pallas(a.reshape(B * S, D), blk["proj_w"],
                                      blk["proj_b"], residual=x2).reshape(B, S, D)

        # ---- MLP branch: x = x + fc2(gelu(fc1(norm2(x))))  (ls2/drop_path2 = id) ----
        x2 = xseq.reshape(B * S, D)
        h = ln_matmul_pallas(x2, blk["ln2_g"], blk["ln2_b"], blk["fc1_w"],
                             bias=blk["fc1_b"], activation="gelu")               # bf16, fused LN+fc1+GELU
        xseq = matmul_residual_pallas(h, blk["fc2_w"], blk["fc2_b"],
                                      residual=x2).reshape(B, S, D)

    # global_pool='token' -> take cls token.  Final LayerNorm is per-row, so norm of the
    # pooled token == norm-then-slice of the reference.  (B, D) work: keep in XLA.
    pooled = xseq[:, 0]                                       # (B, D)
    mean = jnp.mean(pooled, axis=-1, keepdims=True)
    xc = pooled - mean
    var = jnp.mean(xc * xc, axis=-1, keepdims=True)
    pooled = xc * jax.lax.rsqrt(var + 1e-6) * params["norm_g"] + params["norm_b"]
    logits = jnp.dot(pooled, params["head_w"]) + params["head_b"]
    return logits


# --------------------------------- main -------------------------------------

if __name__ == "__main__":
    # Small, forward-consistent config.
    B, C, H, W = 2, 3, 16, 16
    patch = 4
    embed_dim = 32
    depth = 2
    num_heads = 4
    mlp_ratio = 4.0
    num_classes = 10
    num_patches = (H // patch) * (W // patch)

    key = jax.random.PRNGKey(0)
    kx, kp = jax.random.split(key)
    x = jax.random.normal(kx, (B, C, H, W), dtype=jnp.float32)
    params = init_params(
        kp, in_chans=C, patch=patch, embed_dim=embed_dim, depth=depth,
        mlp_ratio=mlp_ratio, num_classes=num_classes, num_patches=num_patches)

    fwd = jax.jit(vit_forward, static_argnames=("patch", "num_heads"))
    logits = fwd(params, x, patch=patch, num_heads=num_heads)
    jax.block_until_ready(logits)
    assert logits.shape == (B, num_classes), logits.shape
    assert bool(jnp.all(jnp.isfinite(logits)))
    print("KERNEL_OK")
</pallas_src>

<mosaic_0001>
module attributes {stable_mosaic.version = 11 : i64} {
  func.func @_ln_matmul_kernel(%arg0: i32, %arg1: i32, %arg2: memref<40x32xf32, #tpu.memory_space<vmem>>, %arg3: memref<1x32xf32, #tpu.memory_space<vmem>>, %arg4: memref<1x32xf32, #tpu.memory_space<vmem>>, %arg5: memref<32x96xbf16, #tpu.memory_space<vmem>>, %arg6: memref<40x96xbf16, #tpu.memory_space<vmem>>, %arg7: memref<40x32xbf16, #tpu.memory_space<vmem>>) attributes {dimension_semantics = [#tpu.dimension_semantics<parallel>, #tpu.dimension_semantics<arbitrary>], iteration_bounds = array<i64: 1, 1>, scalar_prefetch = 0 : i64, scratch_operands = 1 : i64, tpu.core_type = #tpu.core_type<tc>, window_params = [{transform_indices = @transform_0, window_bounds = array<i64: 40, 32>}, {pipeline_mode = #tpu.pipeline_mode<synchronous>, transform_indices = @transform_1, window_bounds = array<i64: 1, 32>}, {pipeline_mode = #tpu.pipeline_mode<synchronous>, transform_indices = @transform_2, window_bounds = array<i64: 1, 32>}, {transform_indices = @transform_3, window_bounds = array<i64: 32, 96>}, {transform_indices = @transform_4, window_bounds = array<i64: 40, 96>}]} {
    %c0_i32 = arith.constant 0 : i32
    %0 = arith.cmpi eq, %arg1, %c0_i32 : i32
    %1 = arith.extui %0 : i1 to i32
    %c0_i32_0 = arith.constant 0 : i32
    %2 = arith.cmpi ne, %1, %c0_i32_0 : i32
    scf.if %2 {
      %c0_6 = arith.constant 0 : index
      %c0_7 = arith.constant 0 : index
      %8 = vector.load %arg2[%c0_6, %c0_7] : memref<40x32xf32, #tpu.memory_space<vmem>>, vector<40x32xf32>
      %cst_8 = arith.constant dense<0.000000e+00> : vector<40xf32>
      %9 = vector.multi_reduction <add>, %8, %cst_8 [1] : vector<40x32xf32> to vector<40xf32>
      %10 = vector.shape_cast %9 : vector<40xf32> to vector<40x1xf32>
      %cst_9 = arith.constant 3.200000e+01 : f32
      %11 = vector.broadcast %cst_9 : f32 to vector<40x1xf32>
      %12 = arith.divf %10, %11 : vector<40x1xf32>
      %13 = vector.broadcast %12 : vector<40x1xf32> to vector<40x32xf32>
      %14 = arith.subf %8, %13 : vector<40x32xf32>
      %15 = arith.mulf %14, %14 : vector<40x32xf32>
      %cst_10 = arith.constant dense<0.000000e+00> : vector<40xf32>
      %16 = vector.multi_reduction <add>, %15, %cst_10 [1] : vector<40x32xf32> to vector<40xf32>
      %17 = vector.shape_cast %16 : vector<40xf32> to vector<40x1xf32>
      %cst_11 = arith.constant 3.200000e+01 : f32
      %18 = vector.broadcast %cst_11 : f32 to vector<40x1xf32>
      %19 = arith.divf %17, %18 : vector<40x1xf32>
      %cst_12 = arith.constant 9.99999997E-7 : f32
      %20 = vector.broadcast %cst_12 : f32 to vector<40x1xf32>
      %21 = arith.addf %19, %20 : vector<40x1xf32>
      %22 = math.rsqrt %21 : vector<40x1xf32>
      %23 = vector.broadcast %22 : vector<40x1xf32> to vector<40x32xf32>
      %24 = arith.mulf %14, %23 : vector<40x32xf32>
      %c0_13 = arith.constant 0 : index
      %c0_14 = arith.constant 0 : index
      %25 = vector.load %arg3[%c0_13, %c0_14] : memref<1x32xf32, #tpu.memory_space<vmem>>, vector<1x32xf32>
      %26 = vector.broadcast %25 : vector<1x32xf32> to vector<40x32xf32>
      %27 = arith.mulf %24, %26 : vector<40x32xf32>
      %c0_15 = arith.constant 0 : index
      %c0_16 = arith.constant 0 : index
      %28 = vector.load %arg4[%c0_15, %c0_16] : memref<1x32xf32, #tpu.memory_space<vmem>>, vector<1x32xf32>
      %29 = vector.broadcast %28 : vector<1x32xf32> to vector<40x32xf32>
      %30 = arith.addf %27, %29 : vector<40x32xf32>
      %31 = arith.truncf %30 : vector<40x32xf32> to vector<40x32xbf16>
      %c0_17 = arith.constant 0 : index
      %c0_18 = arith.constant 0 : index
      %32 = vector.load %arg7[%c0_17, %c0_18] : memref<40x32xbf16, #tpu.memory_space<vmem>>, vector<40x32xbf16>
      tpu.vector_store %arg7[%c0_17, %c0_18], %31 {strides = array<i32>} : memref<40x32xbf16, #tpu.memory_space<vmem>>, vector<40x32xbf16>,
    } else {
    }
    %c0 = arith.constant 0 : index
    %c0_1 = arith.constant 0 : index
    %3 = vector.load %arg7[%c0, %c0_1] : memref<40x32xbf16, #tpu.memory_space<vmem>>, vector<40x32xbf16>
    %c0_2 = arith.constant 0 : index
    %c0_3 = arith.constant 0 : index
    %4 = vector.load %arg5[%c0_2, %c0_3] : memref<32x96xbf16, #tpu.memory_space<vmem>>, vector<32x96xbf16>
    %cst = arith.constant dense<0.000000e+00> : vector<40x96xf32>
    %5 = tpu.matmul %3, %4, %cst {dimension_numbers = #tpu.dot_dimension_numbers<[1], [0], [0], [1], [0, 0, 1, 1], [], []>} : vector<40x32xbf16>, vector<32x96xbf16>, vector<40x96xf32> -> vector<40x96xf32>
    %6 = arith.truncf %5 : vector<40x96xf32> to vector<40x96xbf16>
    %c0_4 = arith.constant 0 : index
    %c0_5 = arith.constant 0 : index
    %7 = vector.load %arg6[%c0_4, %c0_5] : memref<40x96xbf16, #tpu.memory_space<vmem>>, vector<40x96xbf16>
    tpu.vector_store %arg6[%c0_4, %c0_5], %6 {strides = array<i32>} : memref<40x96xbf16, #tpu.memory_space<vmem>>, vector<40x96xbf16>,
    return
  }
  func.func @transform_0(%arg0: i32, %arg1: i32) -> (i32, i32) {
    %c0_i32 = arith.constant 0 : i32
    %c0_i32_0 = arith.constant 0 : i32
    return %arg0, %c0_i32 : i32, i32
  }
  func.func @transform_1(%arg0: i32, %arg1: i32) -> (i32, i32) {
    %c0_i32 = arith.constant 0 : i32
    %c0_i32_0 = arith.constant 0 : i32
    %c0_i32_1 = arith.constant 0 : i32
    return %c0_i32, %c0_i32_0 : i32, i32
  }
  func.func @transform_2(%arg0: i32, %arg1: i32) -> (i32, i32) {
    %c0_i32 = arith.constant 0 : i32
    %c0_i32_0 = arith.constant 0 : i32
    %c0_i32_1 = arith.constant 0 : i32
    return %c0_i32, %c0_i32_0 : i32, i32
  }
  func.func @transform_3(%arg0: i32, %arg1: i32) -> (i32, i32) {
    %c0_i32 = arith.constant 0 : i32
    %c0_i32_0 = arith.constant 0 : i32
    return %c0_i32, %arg1 : i32, i32
  }
  func.func @transform_4(%arg0: i32, %arg1: i32) -> (i32, i32) {
    %c0_i32 = arith.constant 0 : i32
    return %arg0, %arg1 : i32, i32
  }
}

module attributes {stable_mosaic.version = 11 : i64} {
  func.func @_patch_embed_kernel(%arg0: i32, %arg1: memref<1x16x48xf32, #tpu.memory_space<vmem>>, %arg2: memref<48x32xbf16, #tpu.memory_space<vmem>>, %arg3: memref<1x32xf32, #tpu.memory_space<vmem>>, %arg4: memref<16x32xf32, #tpu.memory_space<vmem>>, %arg5: memref<1x16x32xf32, #tpu.memory_space<vmem>>) attributes {dimension_semantics = [#tpu.dimension_semantics<parallel>], iteration_bounds = array<i64: 2>, scalar_prefetch = 0 : i64, scratch_operands = 0 : i64, tpu.core_type = #tpu.core_type<tc>, window_params = [{transform_indices = @transform_0, window_bounds = array<i64: 1, 16, 48>}, {pipeline_mode = #tpu.pipeline_mode<synchronous>, transform_indices = @transform_1, window_bounds = array<i64: 48, 32>}, {pipeline_mode = #tpu.pipeline_mode<synchronous>, transform_indices = @transform_2, window_bounds = array<i64: 1, 32>}, {pipeline_mode = #tpu.pipeline_mode<synchronous>, transform_indices = @transform_3, window_bounds = array<i64: 16, 32>}, {transform_indices = @transform_4, window_bounds = array<i64: 1, 16, 32>}]} {
    %c0 = arith.constant 0 : index
    %c0_0 = arith.constant 0 : index
    %c0_1 = arith.constant 0 : index
    %0 = vector.load %arg1[%c0, %c0_0, %c0_1] : memref<1x16x48xf32, #tpu.memory_space<vmem>>, vector<1x16x48xf32>
    %1 = vector.shape_cast %0 : vector<1x16x48xf32> to vector<16x48xf32>
    %2 = arith.truncf %1 : vector<16x48xf32> to vector<16x48xbf16>
    %c0_2 = arith.constant 0 : index
    %c0_3 = arith.constant 0 : index
    %3 = vector.load %arg2[%c0_2, %c0_3] : memref<48x32xbf16, #tpu.memory_space<vmem>>, vector<48x32xbf16>
    %cst = arith.constant dense<0.000000e+00> : vector<16x32xf32>
    %4 = tpu.matmul %2, %3, %cst {dimension_numbers = #tpu.dot_dimension_numbers<[1], [0], [0], [1], [0, 0, 1, 1], [], []>} : vector<16x48xbf16>, vector<48x32xbf16>, vector<16x32xf32> -> vector<16x32xf32>
    %c0_4 = arith.constant 0 : index
    %c0_5 = arith.constant 0 : index
    %5 = vector.load %arg3[%c0_4, %c0_5] : memref<1x32xf32, #tpu.memory_space<vmem>>, vector<1x32xf32>
    %6 = vector.broadcast %5 : vector<1x32xf32> to vector<16x32xf32>
    %7 = arith.addf %4, %6 : vector<16x32xf32>
    %c0_6 = arith.constant 0 : index
    %c0_7 = arith.constant 0 : index
    %8 = vector.load %arg4[%c0_6, %c0_7] : memref<16x32xf32, #tpu.memory_space<vmem>>, vector<16x32xf32>
    %9 = arith.addf %7, %8 : vector<16x32xf32>
    %c0_8 = arith.constant 0 : index
    %c0_9 = arith.constant 0 : index
    %c0_10 = arith.constant 0 : index
    %10 = vector.load %arg5[%c0_8, %c0_9, %c0_10] : memref<1x16x32xf32, #tpu.memory_space<vmem>>, vector<1x16x32xf32>
    %11 = vector.shape_cast %10 : vector<1x16x32xf32> to vector<16x32xf32>
    %12 = vector.shape_cast %9 : vector<16x32xf32> to vector<1x16x32xf32>
    tpu.vector_store %arg5[%c0_8, %c0_9, %c0_10], %12 {strides = array<i32>} : memref<1x16x32xf32, #tpu.memory_space<vmem>>, vector<1x16x32xf32>,
    return
  }
  func.func @transform_0(%arg0: i32) -> (i32, i32, i32) {
    %c0_i32 = arith.constant 0 : i32
    %c0_i32_0 = arith.constant 0 : i32
    %c0_i32_1 = arith.constant 0 : i32
    return %arg0, %c0_i32, %c0_i32_0 : i32, i32, i32
  }
  func.func @transform_1(%arg0: i32) -> (i32, i32) {
    %c0_i32 = arith.constant 0 : i32
    %c0_i32_0 = arith.constant 0 : i32
    %c0_i32_1 = arith.constant 0 : i32
    return %c0_i32, %c0_i32_0 : i32, i32
  }
  func.func @transform_2(%arg0: i32) -> (i32, i32) {
    %c0_i32 = arith.constant 0 : i32
    %c0_i32_0 = arith.constant 0 : i32
    %c0_i32_1 = arith.constant 0 : i32
    return %c0_i32, %c0_i32_0 : i32, i32
  }
  func.func @transform_3(%arg0: i32) -> (i32, i32) {
    %c0_i32 = arith.constant 0 : i32
    %c0_i32_0 = arith.constant 0 : i32
    %c0_i32_1 = arith.constant 0 : i32
    return %c0_i32, %c0_i32_0 : i32, i32
  }
  func.func @transform_4(%arg0: i32) -> (i32, i32, i32) {
    %c0_i32 = arith.constant 0 : i32
    %c0_i32_0 = arith.constant 0 : i32
    %c0_i32_1 = arith.constant 0 : i32
    return %arg0, %c0_i32, %c0_i32_0 : i32, i32, i32
  }
}

module attributes {stable_mosaic.version = 11 : i64} {
  func.func @_l2_attn_kernel(%arg0: i32, %arg1: memref<1x17x96xbf16, #tpu.memory_space<vmem>>, %arg2: memref<1x17x32xbf16, #tpu.memory_space<vmem>>) attributes {dimension_semantics = [#tpu.dimension_semantics<parallel>], iteration_bounds = array<i64: 2>, scalar_prefetch = 0 : i64, scratch_operands = 0 : i64, tpu.core_type = #tpu.core_type<tc>, window_params = [{transform_indices = @transform_0, window_bounds = array<i64: 1, 17, 96>}, {transform_indices = @transform_1, window_bounds = array<i64: 1, 17, 32>}]} {
    %c0 = arith.constant 0 : index
    %c0_0 = arith.constant 0 : index
    %c0_1 = arith.constant 0 : index
    %0 = vector.load %arg1[%c0, %c0_0, %c0_1] : memref<1x17x96xbf16, #tpu.memory_space<vmem>>, vector<1x17x8xbf16>
    %1 = vector.shape_cast %0 : vector<1x17x8xbf16> to vector<17x8xbf16>
    %c0_2 = arith.constant 0 : index
    %c0_3 = arith.constant 0 : index
    %c32 = arith.constant 32 : index
    %2 = vector.load %arg1[%c0_2, %c0_3, %c32] : memref<1x17x96xbf16, #tpu.memory_space<vmem>>, vector<1x17x8xbf16>
    %3 = vector.shape_cast %2 : vector<1x17x8xbf16> to vector<17x8xbf16>
    %c0_4 = arith.constant 0 : index
    %c0_5 = arith.constant 0 : index
    %c64 = arith.constant 64 : index
    %4 = vector.load %arg1[%c0_4, %c0_5, %c64] : memref<1x17x96xbf16, #tpu.memory_space<vmem>>, vector<1x17x8xbf16>
    %5 = vector.shape_cast %4 : vector<1x17x8xbf16> to vector<17x8xbf16>
    %cst = arith.constant dense<0.000000e+00> : vector<17x17xf32>
    %6 = tpu.matmul %1, %3, %cst {dimension_numbers = #tpu.dot_dimension_numbers<[1], [1], [0], [0], [0, 0, 1, 0], [], []>} : vector<17x8xbf16>, vector<17x8xbf16>, vector<17x17xf32> -> vector<17x17xf32>
    %7 = arith.extf %3 : vector<17x8xbf16> to vector<17x8xf32>
    %8 = arith.mulf %7, %7 : vector<17x8xf32>
    %cst_6 = arith.constant dense<0.000000e+00> : vector<17xf32>
    %9 = vector.multi_reduction <add>, %8, %cst_6 [1] : vector<17x8xf32> to vector<17xf32>
    %10 = vector.shape_cast %9 : vector<17xf32> to vector<17x1xf32>
    %cst_7 = arith.constant 2.000000e+00 : f32
    %11 = vector.broadcast %cst_7 : f32 to vector<17x17xf32>
    %12 = arith.mulf %11, %6 : vector<17x17xf32>
    %13 = tpu.transpose %10, [1, 0] : vector<17x1xf32> -> vector<1x17xf32>
    %14 = vector.broadcast %13 : vector<1x17xf32> to vector<17x17xf32>
    %15 = arith.subf %12, %14 : vector<17x17xf32>
    %cst_8 = arith.constant 0.353553385 : f32
    %16 = vector.broadcast %cst_8 : f32 to vector<17x17xf32>
    %17 = arith.mulf %15, %16 : vector<17x17xf32>
    %cst_9 = arith.constant dense<0xFF800000> : vector<17xf32>
    %18 = vector.multi_reduction <maximumf>, %17, %cst_9 [1] : vector<17x17xf32> to vector<17xf32>
    %19 = vector.shape_cast %18 : vector<17xf32> to vector<17x1xf32>
    %20 = vector.broadcast %19 : vector<17x1xf32> to vector<17x17xf32>
    %21 = arith.subf %17, %20 : vector<17x17xf32>
    %22 = math.exp %21 : vector<17x17xf32>
    %cst_10 = arith.constant dense<0.000000e+00> : vector<17xf32>
    %23 = vector.multi_reduction <add>, %22, %cst_10 [1] : vector<17x17xf32> to vector<17xf32>
    %24 = vector.shape_cast %23 : vector<17xf32> to vector<17x1xf32>
    %25 = tpu.reciprocal %24 {approx = true} : vector<17x1xf32> -> vector<17x1xf32>
    %26 = vector.broadcast %25 : vector<17x1xf32> to vector<17x17xf32>
    %27 = arith.mulf %22, %26 : vector<17x17xf32>
    %28 = arith.truncf %27 : vector<17x17xf32> to vector<17x17xbf16>
    %cst_11 = arith.constant dense<0.000000e+00> : vector<17x8xf32>
    %29 = tpu.matmul %28, %5, %cst_11 {dimension_numbers = #tpu.dot_dimension_numbers<[1], [0], [0], [1], [0, 0, 1, 1], [], []>} : vector<17x17xbf16>, vector<17x8xbf16>, vector<17x8xf32> -> vector<17x8xf32>
    %30 = arith.truncf %29 : vector<17x8xf32> to vector<17x8xbf16>
    %c0_12 = arith.constant 0 : index
    %c0_13 = arith.constant 0 : index
    %c0_14 = arith.constant 0 : index
    %31 = vector.load %arg2[%c0_12, %c0_13, %c0_14] : memref<1x17x32xbf16, #tpu.memory_space<vmem>>, vector<1x17x8xbf16>
    %32 = vector.shape_cast %31 : vector<1x17x8xbf16> to vector<17x8xbf16>
    %33 = vector.shape_cast %30 : vector<17x8xbf16> to vector<1x17x8xbf16>
    tpu.vector_store %arg2[%c0_12, %c0_13, %c0_14], %33 {strides = array<i32>} : memref<1x17x32xbf16, #tpu.memory_space<vmem>>, vector<1x17x8xbf16>,
    %c0_15 = arith.constant 0 : index
    %c0_16 = arith.constant 0 : index
    %c8 = arith.constant 8 : index
    %34 = vector.load %arg1[%c0_15, %c0_16, %c8] : memref<1x17x96xbf16, #tpu.memory_space<vmem>>, vector<1x17x8xbf16>
    %35 = vector.shape_cast %34 : vector<1x17x8xbf16> to vector<17x8xbf16>
    %c0_17 = arith.constant 0 : index
    %c0_18 = arith.constant 0 : index
    %c40 = arith.constant 40 : index
    %36 = vector.load %arg1[%c0_17, %c0_18, %c40] : memref<1x17x96xbf16, #tpu.memory_space<vmem>>, vector<1x17x8xbf16>
    %37 = vector.shape_cast %36 : vector<1x17x8xbf16> to vector<17x8xbf16>
    %c0_19 = arith.constant 0 : index
    %c0_20 = arith.constant 0 : index
    %c72 = arith.constant 72 : index
    %38 = vector.load %arg1[%c0_19, %c0_20, %c72] : memref<1x17x96xbf16, #tpu.memory_space<vmem>>, vector<1x17x8xbf16>
    %39 = vector.shape_cast %38 : vector<1x17x8xbf16> to vector<17x8xbf16>
    %cst_21 = arith.constant dense<0.000000e+00> : vector<17x17xf32>
    %40 = tpu.matmul %35, %37, %cst_21 {dimension_numbers = #tpu.dot_dimension_numbers<[1], [1], [0], [0], [0, 0, 1, 0], [], []>} : vector<17x8xbf16>, vector<17x8xbf16>, vector<17x17xf32> -> vector<17x17xf32>
    %41 = arith.extf %37 : vector<17x8xbf16> to vector<17x8xf32>
    %42 = arith.mulf %41, %41 : vector<17x8xf32>
    %cst_22 = arith.constant dense<0.000000e+00> : vector<17xf32>
    %43 = vector.multi_reduction <add>, %42, %cst_22 [1] : vector<17x8xf32> to vector<17xf32>
    %44 = vector.shape_cast %43 : vector<17xf32> to vector<17x1xf32>
    %cst_23 = arith.constant 2.000000e+00 : f32
    %45 = vector.broadcast %cst_23 : f32 to vector<17x17xf32>
    %46 = arith.mulf %45, %40 : vector<17x17xf32>
    %47 = tpu.transpose %44, [1, 0] : vector<17x1xf32> -> vector<1x17xf32>
    %48 = vector.broadcast %47 : vector<1x17xf32> to vector<17x17xf32>
    %49 = arith.subf %46, %48 : vector<17x17xf32>
    %cst_24 = arith.constant 0.353553385 : f32
    %50 = vector.broadcast %cst_24 : f32 to vector<17x17xf32>
    %51 = arith.mulf %49, %50 : vector<17x17xf32>
    %cst_25 = arith.constant dense<0xFF800000> : vector<17xf32>
    %52 = vector.multi_reduction <maximumf>, %51, %cst_25 [1] : vector<17x17xf32> to vector<17xf32>
    %53 = vector.shape_cast %52 : vector<17xf32> to vector<17x1xf32>
    %54 = vector.broadcast %53 : vector<17x1xf32> to vector<17x17xf32>
    %55 = arith.subf %51, %54 : vector<17x17xf32>
    %56 = math.exp %55 : vector<17x17xf32>
    %cst_26 = arith.constant dense<0.000000e+00> : vector<17xf32>
    %57 = vector.multi_reduction <add>, %56, %cst_26 [1] : vector<17x17xf32> to vector<17xf32>
    %58 = vector.shape_cast %57 : vector<17xf32> to vector<17x1xf32>
    %59 = tpu.reciprocal %58 {approx = true} : vector<17x1xf32> -> vector<17x1xf32>
    %60 = vector.broadcast %59 : vector<17x1xf32> to vector<17x17xf32>
    %61 = arith.mulf %56, %60 : vector<17x17xf32>
    %62 = arith.truncf %61 : vector<17x17xf32> to vector<17x17xbf16>
    %cst_27 = arith.constant dense<0.000000e+00> : vector<17x8xf32>
    %63 = tpu.matmul %62, %39, %cst_27 {dimension_numbers = #tpu.dot_dimension_numbers<[1], [0], [0], [1], [0, 0, 1, 1], [], []>} : vector<17x17xbf16>, vector<17x8xbf16>, vector<17x8xf32> -> vector<17x8xf32>
    %64 = arith.truncf %63 : vector<17x8xf32> to vector<17x8xbf16>
    %c0_28 = arith.constant 0 : index
    %c0_29 = arith.constant 0 : index
    %c8_30 = arith.constant 8 : index
    %65 = vector.load %arg2[%c0_28, %c0_29, %c8_30] : memref<1x17x32xbf16, #tpu.memory_space<vmem>>, vector<1x17x8xbf16>
    %66 = vector.shape_cast %65 : vector<1x17x8xbf16> to vector<17x8xbf16>
    %67 = vector.shape_cast %64 : vector<17x8xbf16> to vector<1x17x8xbf16>
    tpu.vector_store %arg2[%c0_28, %c0_29, %c8_30], %67 {strides = array<i32>} : memref<1x17x32xbf16, #tpu.memory_space<vmem>>, vector<1x17x8xbf16>,
    %c0_31 = arith.constant 0 : index
    %c0_32 = arith.constant 0 : index
    %c16 = arith.constant 16 : index
    %68 = vector.load %arg1[%c0_31, %c0_32, %c16] : memref<1x17x96xbf16, #tpu.memory_space<vmem>>, vector<1x17x8xbf16>
    %69 = vector.shape_cast %68 : vector<1x17x8xbf16> to vector<17x8xbf16>
    %c0_33 = arith.constant 0 : index
    %c0_34 = arith.constant 0 : index
    %c48 = arith.constant 48 : index
    %70 = vector.load %arg1[%c0_33, %c0_34, %c48] : memref<1x17x96xbf16, #tpu.memory_space<vmem>>, vector<1x17x8xbf16>
    %71 = vector.shape_cast %70 : vector<1x17x8xbf16> to vector<17x8xbf16>
    %c0_35 = arith.constant 0 : index
    %c0_36 = arith.constant 0 : index
    %c80 = arith.constant 80 : index
    %72 = vector.load %arg1[%c0_35, %c0_36, %c80] : memref<1x17x96xbf16, #tpu.memory_space<vmem>>, vector<1x17x8xbf16>
    %73 = vector.shape_cast %72 : vector<1x17x8xbf16> to vector<17x8xbf16>
    %cst_37 = arith.constant dense<0.000000e+00> : vector<17x17xf32>
    %74 = tpu.matmul %69, %71, %cst_37 {dimension_numbers = #tpu.dot_dimension_numbers<[1], [1], [0], [0], [0, 0, 1, 0], [], []>} : vector<17x8xbf16>, vector<17x8xbf16>, vector<17x17xf32> -> vector<17x17xf32>
    %75 = arith.extf %71 : vector<17x8xbf16> to vector<17x8xf32>
    %76 = arith.mulf %75, %75 : vector<17x8xf32>
    %cst_38 = arith.constant dense<0.000000e+00> : vector<17xf32>
    %77 = vector.multi_reduction <add>, %76, %cst_38 [1] : vector<17x8xf32> to vector<17xf32>
    %78 = vector.shape_cast %77 : vector<17xf32> to vector<17x1xf32>
    %cst_39 = arith.constant 2.000000e+00 : f32
    %79 = vector.broadcast %cst_39 : f32 to vector<17x17xf32>
    %80 = arith.mulf %79, %74 : vector<17x17xf32>
    %81 = tpu.transpose %78, [1, 0] : vector<17x1xf32> -> vector<1x17xf32>
    %82 = vector.broadcast %81 : vector<1x17xf32> to vector<17x17xf32>
    %83 = arith.subf %80, %82 : vector<17x17xf32>
    %cst_40 = arith.constant 0.353553385 : f32
    %84 = vector.broadcast %cst_40 : f32 to vector<17x17xf32>
    %85 = arith.mulf %83, %84 : vector<17x17xf32>
    %cst_41 = arith.constant dense<0xFF800000> : vector<17xf32>
    %86 = vector.multi_reduction <maximumf>, %85, %cst_41 [1] : vector<17x17xf32> to vector<17xf32>
    %87 = vector.shape_cast %86 : vector<17xf32> to vector<17x1xf32>
    %88 = vector.broadcast %87 : vector<17x1xf32> to vector<17x17xf32>
    %89 = arith.subf %85, %88 : vector<17x17xf32>
    %90 = math.exp %89 : vector<17x17xf32>
    %cst_42 = arith.constant dense<0.000000e+00> : vector<17xf32>
    %91 = vector.multi_reduction <add>, %90, %cst_42 [1] : vector<17x17xf32> to vector<17xf32>
    %92 = vector.shape_cast %91 : vector<17xf32> to vector<17x1xf32>
    %93 = tpu.reciprocal %92 {approx = true} : vector<17x1xf32> -> vector<17x1xf32>
    %94 = vector.broadcast %93 : vector<17x1xf32> to vector<17x17xf32>
    %95 = arith.mulf %90, %94 : vector<17x17xf32>
    %96 = arith.truncf %95 : vector<17x17xf32> to vector<17x17xbf16>
    %cst_43 = arith.constant dense<0.000000e+00> : vector<17x8xf32>
    %97 = tpu.matmul %96, %73, %cst_43 {dimension_numbers = #tpu.dot_dimension_numbers<[1], [0], [0], [1], [0, 0, 1, 1], [], []>} : vector<17x17xbf16>, vector<17x8xbf16>, vector<17x8xf32> -> vector<17x8xf32>
    %98 = arith.truncf %97 : vector<17x8xf32> to vector<17x8xbf16>
    %c0_44 = arith.constant 0 : index
    %c0_45 = arith.constant 0 : index
    %c16_46 = arith.constant 16 : index
    %99 = vector.load %arg2[%c0_44, %c0_45, %c16_46] : memref<1x17x32xbf16, #tpu.memory_space<vmem>>, vector<1x17x8xbf16>
    %100 = vector.shape_cast %99 : vector<1x17x8xbf16> to vector<17x8xbf16>
    %101 = vector.shape_cast %98 : vector<17x8xbf16> to vector<1x17x8xbf16>
    tpu.vector_store %arg2[%c0_44, %c0_45, %c16_46], %101 {strides = array<i32>} : memref<1x17x32xbf16, #tpu.memory_space<vmem>>, vector<1x17x8xbf16>,
    %c0_47 = arith.constant 0 : index
    %c0_48 = arith.constant 0 : index
    %c24 = arith.constant 24 : index
    %102 = vector.load %arg1[%c0_47, %c0_48, %c24] : memref<1x17x96xbf16, #tpu.memory_space<vmem>>, vector<1x17x8xbf16>
    %103 = vector.shape_cast %102 : vector<1x17x8xbf16> to vector<17x8xbf16>
    %c0_49 = arith.constant 0 : index
    %c0_50 = arith.constant 0 : index
    %c56 = arith.constant 56 : index
    %104 = vector.load %arg1[%c0_49, %c0_50, %c56] : memref<1x17x96xbf16, #tpu.memory_space<vmem>>, vector<1x17x8xbf16>
    %105 = vector.shape_cast %104 : vector<1x17x8xbf16> to vector<17x8xbf16>
    %c0_51 = arith.constant 0 : index
    %c0_52 = arith.constant 0 : index
    %c88 = arith.constant 88 : index
    %106 = vector.load %arg1[%c0_51, %c0_52, %c88] : memref<1x17x96xbf16, #tpu.memory_space<vmem>>, vector<1x17x8xbf16>
    %107 = vector.shape_cast %106 : vector<1x17x8xbf16> to vector<17x8xbf16>
    %cst_53 = arith.constant dense<0.000000e+00> : vector<17x17xf32>
    %108 = tpu.matmul %103, %105, %cst_53 {dimension_numbers = #tpu.dot_dimension_numbers<[1], [1], [0], [0], [0, 0, 1, 0], [], []>} : vector<17x8xbf16>, vector<17x8xbf16>, vector<17x17xf32> -> vector<17x17xf32>
    %109 = arith.extf %105 : vector<17x8xbf16> to vector<17x8xf32>
    %110 = arith.mulf %109, %109 : vector<17x8xf32>
    %cst_54 = arith.constant dense<0.000000e+00> : vector<17xf32>
    %111 = vector.multi_reduction <add>, %110, %cst_54 [1] : vector<17x8xf32> to vector<17xf32>
    %112 = vector.shape_cast %111 : vector<17xf32> to vector<17x1xf32>
    %cst_55 = arith.constant 2.000000e+00 : f32
    %113 = vector.broadcast %cst_55 : f32 to vector<17x17xf32>
    %114 = arith.mulf %113, %108 : vector<17x17xf32>
    %115 = tpu.transpose %112, [1, 0] : vector<17x1xf32> -> vector<1x17xf32>
    %116 = vector.broadcast %115 : vector<1x17xf32> to vector<17x17xf32>
    %117 = arith.subf %114, %116 : vector<17x17xf32>
    %cst_56 = arith.constant 0.353553385 : f32
    %118 = vector.broadcast %cst_56 : f32 to vector<17x17xf32>
    %119 = arith.mulf %117, %118 : vector<17x17xf32>
    %cst_57 = arith.constant dense<0xFF800000> : vector<17xf32>
    %120 = vector.multi_reduction <maximumf>, %119, %cst_57 [1] : vector<17x17xf32> to vector<17xf32>
    %121 = vector.shape_cast %120 : vector<17xf32> to vector<17x1xf32>
    %122 = vector.broadcast %121 : vector<17x1xf32> to vector<17x17xf32>
    %123 = arith.subf %119, %122 : vector<17x17xf32>
    %124 = math.exp %123 : vector<17x17xf32>
    %cst_58 = arith.constant dense<0.000000e+00> : vector<17xf32>
    %125 = vector.multi_reduction <add>, %124, %cst_58 [1] : vector<17x17xf32> to vector<17xf32>
    %126 = vector.shape_cast %125 : vector<17xf32> to vector<17x1xf32>
    %127 = tpu.reciprocal %126 {approx = true} : vector<17x1xf32> -> vector<17x1xf32>
    %128 = vector.broadcast %127 : vector<17x1xf32> to vector<17x17xf32>
    %129 = arith.mulf %124, %128 : vector<17x17xf32>
    %130 = arith.truncf %129 : vector<17x17xf32> to vector<17x17xbf16>
    %cst_59 = arith.constant dense<0.000000e+00> : vector<17x8xf32>
    %131 = tpu.matmul %130, %107, %cst_59 {dimension_numbers = #tpu.dot_dimension_numbers<[1], [0], [0], [1], [0, 0, 1, 1], [], []>} : vector<17x17xbf16>, vector<17x8xbf16>, vector<17x8xf32> -> vector<17x8xf32>
    %132 = arith.truncf %131 : vector<17x8xf32> to vector<17x8xbf16>
    %c0_60 = arith.constant 0 : index
    %c0_61 = arith.constant 0 : index
    %c24_62 = arith.constant 24 : index
    %133 = vector.load %arg2[%c0_60, %c0_61, %c24_62] : memref<1x17x32xbf16, #tpu.memory_space<vmem>>, vector<1x17x8xbf16>
    %134 = vector.shape_cast %133 : vector<1x17x8xbf16> to vector<17x8xbf16>
    %135 = vector.shape_cast %132 : vector<17x8xbf16> to vector<1x17x8xbf16>
    tpu.vector_store %arg2[%c0_60, %c0_61, %c24_62], %135 {strides = array<i32>} : memref<1x17x32xbf16, #tpu.memory_space<vmem>>, vector<1x17x8xbf16>,
    return
  }
  func.func @transform_0(%arg0: i32) -> (i32, i32, i32) {
    %c0_i32 = arith.constant 0 : i32
    %c0_i32_0 = arith.constant 0 : i32
    %c0_i32_1 = arith.constant 0 : i32
    return %arg0, %c0_i32, %c0_i32_0 : i32, i32, i32
  }
  func.func @transform_1(%arg0: i32) -> (i32, i32, i32) {
    %c0_i32 = arith.constant 0 : i32
    %c0_i32_0 = arith.constant 0 : i32
    %c0_i32_1 = arith.constant 0 : i32
    return %arg0, %c0_i32, %c0_i32_0 : i32, i32, i32
  }
}

module attributes {stable_mosaic.version = 11 : i64} {
  func.func @_matmul_residual_kernel(%arg0: i32, %arg1: i32, %arg2: i32, %arg3: memref<40x32xbf16, #tpu.memory_space<vmem>>, %arg4: memref<32x32xbf16, #tpu.memory_space<vmem>>, %arg5: memref<1x32xf32, #tpu.memory_space<vmem>>, %arg6: memref<40x32xf32, #tpu.memory_space<vmem>>, %arg7: memref<40x32xf32, #tpu.memory_space<vmem>>, %arg8: memref<40x32xf32, #tpu.memory_space<vmem>>) attributes {dimension_semantics = [#tpu.dimension_semantics<parallel>, #tpu.dimension_semantics<parallel>, #tpu.dimension_semantics<arbitrary>], iteration_bounds = array<i64: 1, 1, 1>, scalar_prefetch = 0 : i64, scratch_operands = 1 : i64, tpu.core_type = #tpu.core_type<tc>, window_params = [{transform_indices = @transform_0, window_bounds = array<i64: 40, 32>}, {transform_indices = @transform_1, window_bounds = array<i64: 32, 32>}, {transform_indices = @transform_2, window_bounds = array<i64: 1, 32>}, {transform_indices = @transform_3, window_bounds = array<i64: 40, 32>}, {transform_indices = @transform_4, window_bounds = array<i64: 40, 32>}]} {
    %c0_i32 = arith.constant 0 : i32
    %0 = arith.cmpi eq, %arg2, %c0_i32 : i32
    %1 = arith.extui %0 : i1 to i32
    %c0_i32_0 = arith.constant 0 : i32
    %2 = arith.cmpi ne, %1, %c0_i32_0 : i32
    scf.if %2 {
      %cst_10 = arith.constant 0.000000e+00 : f32
      %12 = vector.broadcast %cst_10 : f32 to vector<40x32xf32>
      %c0_11 = arith.constant 0 : index
      %c0_12 = arith.constant 0 : index
      %13 = vector.load %arg8[%c0_11, %c0_12] : memref<40x32xf32, #tpu.memory_space<vmem>>, vector<40x32xf32>
      tpu.vector_store %arg8[%c0_11, %c0_12], %12 {strides = array<i32>} : memref<40x32xf32, #tpu.memory_space<vmem>>, vector<40x32xf32>,
    } else {
    }
    %c0 = arith.constant 0 : index
    %c0_1 = arith.constant 0 : index
    %3 = vector.load %arg8[%c0, %c0_1] : memref<40x32xf32, #tpu.memory_space<vmem>>, vector<40x32xf32>
    %c0_2 = arith.constant 0 : index
    %c0_3 = arith.constant 0 : index
    %4 = vector.load %arg3[%c0_2, %c0_3] : memref<40x32xbf16, #tpu.memory_space<vmem>>, vector<40x32xbf16>
    %c0_4 = arith.constant 0 : index
    %c0_5 = arith.constant 0 : index
    %5 = vector.load %arg4[%c0_4, %c0_5] : memref<32x32xbf16, #tpu.memory_space<vmem>>, vector<32x32xbf16>
    %cst = arith.constant dense<0.000000e+00> : vector<40x32xf32>
    %6 = tpu.matmul %4, %5, %cst {dimension_numbers = #tpu.dot_dimension_numbers<[1], [0], [0], [1], [0, 0, 1, 1], [], []>} : vector<40x32xbf16>, vector<32x32xbf16>, vector<40x32xf32> -> vector<40x32xf32>
    %7 = arith.addf %3, %6 : vector<40x32xf32>
    %c0_6 = arith.constant 0 : index
    %c0_7 = arith.constant 0 : index
    %8 = vector.load %arg8[%c0_6, %c0_7] : memref<40x32xf32, #tpu.memory_space<vmem>>, vector<40x32xf32>
    tpu.vector_store %arg8[%c0_6, %c0_7], %7 {strides = array<i32>} : memref<40x32xf32, #tpu.memory_space<vmem>>, vector<40x32xf32>,
    %c0_i32_8 = arith.constant 0 : i32
    %9 = arith.cmpi eq, %arg2, %c0_i32_8 : i32
    %10 = arith.extui %9 : i1 to i32
    %c0_i32_9 = arith.constant 0 : i32
    %11 = arith.cmpi ne, %10, %c0_i32_9 : i32
    scf.if %11 {
      %c0_10 = arith.constant 0 : index
      %c0_11 = arith.constant 0 : index
      %12 = vector.load %arg8[%c0_10, %c0_11] : memref<40x32xf32, #tpu.memory_space<vmem>>, vector<40x32xf32>
      %c0_12 = arith.constant 0 : index
      %c0_13 = arith.constant 0 : index
      %13 = vector.load %arg5[%c0_12, %c0_13] : memref<1x32xf32, #tpu.memory_space<vmem>>, vector<1x32xf32>
      %14 = vector.broadcast %13 : vector<1x32xf32> to vector<40x32xf32>
      %15 = arith.addf %12, %14 : vector<40x32xf32>
      %c0_14 = arith.constant 0 : index
      %c0_15 = arith.constant 0 : index
      %16 = vector.load %arg6[%c0_14, %c0_15] : memref<40x32xf32, #tpu.memory_space<vmem>>, vector<40x32xf32>
      %17 = arith.addf %15, %16 : vector<40x32xf32>
      %c0_16 = arith.constant 0 : index
      %c0_17 = arith.constant 0 : index
      %18 = vector.load %arg7[%c0_16, %c0_17] : memref<40x32xf32, #tpu.memory_space<vmem>>, vector<40x32xf32>
      tpu.vector_store %arg7[%c0_16, %c0_17], %17 {strides = array<i32>} : memref<40x32xf32, #tpu.memory_space<vmem>>, vector<40x32xf32>,
    } else {
    }
    return
  }
  func.func @transform_0(%arg0: i32, %arg1: i32, %arg2: i32) -> (i32, i32) {
    %c0_i32 = arith.constant 0 : i32
    return %arg0, %arg2 : i32, i32
  }
  func.func @transform_1(%arg0: i32, %arg1: i32, %arg2: i32) -> (i32, i32) {
    %c0_i32 = arith.constant 0 : i32
    return %arg2, %arg1 : i32, i32
  }
  func.func @transform_2(%arg0: i32, %arg1: i32, %arg2: i32) -> (i32, i32) {
    %c0_i32 = arith.constant 0 : i32
    %c0_i32_0 = arith.constant 0 : i32
    return %c0_i32, %arg1 : i32, i32
  }
  func.func @transform_3(%arg0: i32, %arg1: i32, %arg2: i32) -> (i32, i32) {
    %c0_i32 = arith.constant 0 : i32
    return %arg0, %arg1 : i32, i32
  }
  func.func @transform_4(%arg0: i32, %arg1: i32, %arg2: i32) -> (i32, i32) {
    %c0_i32 = arith.constant 0 : i32
    return %arg0, %arg1 : i32, i32
  }
}

module attributes {stable_mosaic.version = 11 : i64} {
  func.func @_ln_matmul_kernel(%arg0: i32, %arg1: i32, %arg2: memref<40x32xf32, #tpu.memory_space<vmem>>, %arg3: memref<1x32xf32, #tpu.memory_space<vmem>>, %arg4: memref<1x32xf32, #tpu.memory_space<vmem>>, %arg5: memref<32x128xbf16, #tpu.memory_space<vmem>>, %arg6: memref<1x128xf32, #tpu.memory_space<vmem>>, %arg7: memref<40x128xbf16, #tpu.memory_space<vmem>>, %arg8: memref<40x32xbf16, #tpu.memory_space<vmem>>) attributes {dimension_semantics = [#tpu.dimension_semantics<parallel>, #tpu.dimension_semantics<arbitrary>], iteration_bounds = array<i64: 1, 1>, scalar_prefetch = 0 : i64, scratch_operands = 1 : i64, tpu.core_type = #tpu.core_type<tc>, window_params = [{transform_indices = @transform_0, window_bounds = array<i64: 40, 32>}, {pipeline_mode = #tpu.pipeline_mode<synchronous>, transform_indices = @transform_1, window_bounds = array<i64: 1, 32>}, {pipeline_mode = #tpu.pipeline_mode<synchronous>, transform_indices = @transform_2, window_bounds = array<i64: 1, 32>}, {transform_indices = @transform_3, window_bounds = array<i64: 32, 128>}, {transform_indices = @transform_4, window_bounds = array<i64: 1, 128>}, {transform_indices = @transform_5, window_bounds = array<i64: 40, 128>}]} {
    %c0_i32 = arith.constant 0 : i32
    %0 = arith.cmpi eq, %arg1, %c0_i32 : i32
    %1 = arith.extui %0 : i1 to i32
    %c0_i32_0 = arith.constant 0 : i32
    %2 = arith.cmpi ne, %1, %c0_i32_0 : i32
    scf.if %2 {
      %c0_12 = arith.constant 0 : index
      %c0_13 = arith.constant 0 : index
      %24 = vector.load %arg2[%c0_12, %c0_13] : memref<40x32xf32, #tpu.memory_space<vmem>>, vector<40x32xf32>
      %cst_14 = arith.constant dense<0.000000e+00> : vector<40xf32>
      %25 = vector.multi_reduction <add>, %24, %cst_14 [1] : vector<40x32xf32> to vector<40xf32>
      %26 = vector.shape_cast %25 : vector<40xf32> to vector<40x1xf32>
      %cst_15 = arith.constant 3.200000e+01 : f32
      %27 = vector.broadcast %cst_15 : f32 to vector<40x1xf32>
      %28 = arith.divf %26, %27 : vector<40x1xf32>
      %29 = vector.broadcast %28 : vector<40x1xf32> to vector<40x32xf32>
      %30 = arith.subf %24, %29 : vector<40x32xf32>
      %31 = arith.mulf %30, %30 : vector<40x32xf32>
      %cst_16 = arith.constant dense<0.000000e+00> : vector<40xf32>
      %32 = vector.multi_reduction <add>, %31, %cst_16 [1] : vector<40x32xf32> to vector<40xf32>
      %33 = vector.shape_cast %32 : vector<40xf32> to vector<40x1xf32>
      %cst_17 = arith.constant 3.200000e+01 : f32
      %34 = vector.broadcast %cst_17 : f32 to vector<40x1xf32>
      %35 = arith.divf %33, %34 : vector<40x1xf32>
      %cst_18 = arith.constant 9.99999997E-7 : f32
      %36 = vector.broadcast %cst_18 : f32 to vector<40x1xf32>
      %37 = arith.addf %35, %36 : vector<40x1xf32>
      %38 = math.rsqrt %37 : vector<40x1xf32>
      %39 = vector.broadcast %38 : vector<40x1xf32> to vector<40x32xf32>
      %40 = arith.mulf %30, %39 : vector<40x32xf32>
      %c0_19 = arith.constant 0 : index
      %c0_20 = arith.constant 0 : index
      %41 = vector.load %arg3[%c0_19, %c0_20] : memref<1x32xf32, #tpu.memory_space<vmem>>, vector<1x32xf32>
      %42 = vector.broadcast %41 : vector<1x32xf32> to vector<40x32xf32>
      %43 = arith.mulf %40, %42 : vector<40x32xf32>
      %c0_21 = arith.constant 0 : index
      %c0_22 = arith.constant 0 : index
      %44 = vector.load %arg4[%c0_21, %c0_22] : memref<1x32xf32, #tpu.memory_space<vmem>>, vector<1x32xf32>
      %45 = vector.broadcast %44 : vector<1x32xf32> to vector<40x32xf32>
      %46 = arith.addf %43, %45 : vector<40x32xf32>
      %47 = arith.truncf %46 : vector<40x32xf32> to vector<40x32xbf16>
      %c0_23 = arith.constant 0 : index
      %c0_24 = arith.constant 0 : index
      %48 = vector.load %arg8[%c0_23, %c0_24] : memref<40x32xbf16, #tpu.memory_space<vmem>>, vector<40x32xbf16>
      tpu.vector_store %arg8[%c0_23, %c0_24], %47 {strides = array<i32>} : memref<40x32xbf16, #tpu.memory_space<vmem>>, vector<40x32xbf16>,
    } else {
    }
    %c0 = arith.constant 0 : index
    %c0_1 = arith.constant 0 : index
    %3 = vector.load %arg8[%c0, %c0_1] : memref<40x32xbf16, #tpu.memory_space<vmem>>, vector<40x32xbf16>
    %c0_2 = arith.constant 0 : index
    %c0_3 = arith.constant 0 : index
    %4 = vector.load %arg5[%c0_2, %c0_3] : memref<32x128xbf16, #tpu.memory_space<vmem>>, vector<32x128xbf16>
    %cst = arith.constant dense<0.000000e+00> : vector<40x128xf32>
    %5 = tpu.matmul %3, %4, %cst {dimension_numbers = #tpu.dot_dimension_numbers<[1], [0], [0], [1], [0, 0, 1, 1], [], []>} : vector<40x32xbf16>, vector<32x128xbf16>, vector<40x128xf32> -> vector<40x128xf32>
    %c0_4 = arith.constant 0 : index
    %c0_5 = arith.constant 0 : index
    %6 = vector.load %arg6[%c0_4, %c0_5] : memref<1x128xf32, #tpu.memory_space<vmem>>, vector<1x128xf32>
    %7 = vector.broadcast %6 : vector<1x128xf32> to vector<40x128xf32>
    %8 = arith.addf %5, %7 : vector<40x128xf32>
    %cst_6 = arith.constant 5.000000e-01 : f32
    %9 = vector.broadcast %cst_6 : f32 to vector<40x128xf32>
    %10 = arith.mulf %9, %8 : vector<40x128xf32>
    %cst_7 = arith.constant 4.471500e-02 : f32
    %11 = vector.broadcast %cst_7 : f32 to vector<40x128xf32>
    %12 = arith.mulf %11, %8 : vector<40x128xf32>
    %13 = arith.mulf %12, %8 : vector<40x128xf32>
    %14 = arith.mulf %13, %8 : vector<40x128xf32>
    %15 = arith.addf %8, %14 : vector<40x128xf32>
    %cst_8 = arith.constant 0.797884583 : f32
    %16 = vector.broadcast %cst_8 : f32 to vector<40x128xf32>
    %17 = arith.mulf %16, %15 : vector<40x128xf32>
    %18 = math.tanh %17 : vector<40x128xf32>
    %cst_9 = arith.constant 1.000000e+00 : f32
    %19 = vector.broadcast %cst_9 : f32 to vector<40x128xf32>
    %20 = arith.addf %19, %18 : vector<40x128xf32>
    %21 = arith.mulf %10, %20 : vector<40x128xf32>
    %22 = arith.truncf %21 : vector<40x128xf32> to vector<40x128xbf16>
    %c0_10 = arith.constant 0 : index
    %c0_11 = arith.constant 0 : index
    %23 = vector.load %arg7[%c0_10, %c0_11] : memref<40x128xbf16, #tpu.memory_space<vmem>>, vector<40x128xbf16>
    tpu.vector_store %arg7[%c0_10, %c0_11], %22 {strides = array<i32>} : memref<40x128xbf16, #tpu.memory_space<vmem>>, vector<40x128xbf16>,
    return
  }
  func.func @transform_0(%arg0: i32, %arg1: i32) -> (i32, i32) {
    %c0_i32 = arith.constant 0 : i32
    %c0_i32_0 = arith.constant 0 : i32
    return %arg0, %c0_i32 : i32, i32
  }
  func.func @transform_1(%arg0: i32, %arg1: i32) -> (i32, i32) {
    %c0_i32 = arith.constant 0 : i32
    %c0_i32_0 = arith.constant 0 : i32
    %c0_i32_1 = arith.constant 0 : i32
    return %c0_i32, %c0_i32_0 : i32, i32
  }
  func.func @transform_2(%arg0: i32, %arg1: i32) -> (i32, i32) {
    %c0_i32 = arith.constant 0 : i32
    %c0_i32_0 = arith.constant 0 : i32
    %c0_i32_1 = arith.constant 0 : i32
    return %c0_i32, %c0_i32_0 : i32, i32
  }
  func.func @transform_3(%arg0: i32, %arg1: i32) -> (i32, i32) {
    %c0_i32 = arith.constant 0 : i32
    %c0_i32_0 = arith.constant 0 : i32
    return %c0_i32, %arg1 : i32, i32
  }
  func.func @transform_4(%arg0: i32, %arg1: i32) -> (i32, i32) {
    %c0_i32 = arith.constant 0 : i32
    %c0_i32_0 = arith.constant 0 : i32
    return %c0_i32, %arg1 : i32, i32
  }
  func.func @transform_5(%arg0: i32, %arg1: i32) -> (i32, i32) {
    %c0_i32 = arith.constant 0 : i32
    return %arg0, %arg1 : i32, i32
  }
}

module attributes {stable_mosaic.version = 11 : i64} {
  func.func @_matmul_residual_kernel(%arg0: i32, %arg1: i32, %arg2: i32, %arg3: memref<40x128xbf16, #tpu.memory_space<vmem>>, %arg4: memref<128x32xbf16, #tpu.memory_space<vmem>>, %arg5: memref<1x32xf32, #tpu.memory_space<vmem>>, %arg6: memref<40x32xf32, #tpu.memory_space<vmem>>, %arg7: memref<40x32xf32, #tpu.memory_space<vmem>>, %arg8: memref<40x32xf32, #tpu.memory_space<vmem>>) attributes {dimension_semantics = [#tpu.dimension_semantics<parallel>, #tpu.dimension_semantics<parallel>, #tpu.dimension_semantics<arbitrary>], iteration_bounds = array<i64: 1, 1, 1>, scalar_prefetch = 0 : i64, scratch_operands = 1 : i64, tpu.core_type = #tpu.core_type<tc>, window_params = [{transform_indices = @transform_0, window_bounds = array<i64: 40, 128>}, {transform_indices = @transform_1, window_bounds = array<i64: 128, 32>}, {transform_indices = @transform_2, window_bounds = array<i64: 1, 32>}, {transform_indices = @transform_3, window_bounds = array<i64: 40, 32>}, {transform_indices = @transform_4, window_bounds = array<i64: 40, 32>}]} {
    %c0_i32 = arith.constant 0 : i32
    %0 = arith.cmpi eq, %arg2, %c0_i32 : i32
    %1 = arith.extui %0 : i1 to i32
    %c0_i32_0 = arith.constant 0 : i32
    %2 = arith.cmpi ne, %1, %c0_i32_0 : i32
    scf.if %2 {
      %cst_10 = arith.constant 0.000000e+00 : f32
      %12 = vector.broadcast %cst_10 : f32 to vector<40x32xf32>
      %c0_11 = arith.constant 0 : index
      %c0_12 = arith.constant 0 : index
      %13 = vector.load %arg8[%c0_11, %c0_12] : memref<40x32xf32, #tpu.memory_space<vmem>>, vector<40x32xf32>
      tpu.vector_store %arg8[%c0_11, %c0_12], %12 {strides = array<i32>} : memref<40x32xf32, #tpu.memory_space<vmem>>, vector<40x32xf32>,
    } else {
    }
    %c0 = arith.constant 0 : index
    %c0_1 = arith.constant 0 : index
    %3 = vector.load %arg8[%c0, %c0_1] : memref<40x32xf32, #tpu.memory_space<vmem>>, vector<40x32xf32>
    %c0_2 = arith.constant 0 : index
    %c0_3 = arith.constant 0 : index
    %4 = vector.load %arg3[%c0_2, %c0_3] : memref<40x128xbf16, #tpu.memory_space<vmem>>, vector<40x128xbf16>
    %c0_4 = arith.constant 0 : index
    %c0_5 = arith.constant 0 : index
    %5 = vector.load %arg4[%c0_4, %c0_5] : memref<128x32xbf16, #tpu.memory_space<vmem>>, vector<128x32xbf16>
    %cst = arith.constant dense<0.000000e+00> : vector<40x32xf32>
    %6 = tpu.matmul %4, %5, %cst {dimension_numbers = #tpu.dot_dimension_numbers<[1], [0], [0], [1], [0, 0, 1, 1], [], []>} : vector<40x128xbf16>, vector<128x32xbf16>, vector<40x32xf32> -> vector<40x32xf32>
    %7 = arith.addf %3, %6 : vector<40x32xf32>
    %c0_6 = arith.constant 0 : index
    %c0_7 = arith.constant 0 : index
    %8 = vector.load %arg8[%c0_6, %c0_7] : memref<40x32xf32, #tpu.memory_space<vmem>>, vector<40x32xf32>
    tpu.vector_store %arg8[%c0_6, %c0_7], %7 {strides = array<i32>} : memref<40x32xf32, #tpu.memory_space<vmem>>, vector<40x32xf32>,
    %c0_i32_8 = arith.constant 0 : i32
    %9 = arith.cmpi eq, %arg2, %c0_i32_8 : i32
    %10 = arith.extui %9 : i1 to i32
    %c0_i32_9 = arith.constant 0 : i32
    %11 = arith.cmpi ne, %10, %c0_i32_9 : i32
    scf.if %11 {
      %c0_10 = arith.constant 0 : index
      %c0_11 = arith.constant 0 : index
      %12 = vector.load %arg8[%c0_10, %c0_11] : memref<40x32xf32, #tpu.memory_space<vmem>>, vector<40x32xf32>
      %c0_12 = arith.constant 0 : index
      %c0_13 = arith.constant 0 : index
      %13 = vector.load %arg5[%c0_12, %c0_13] : memref<1x32xf32, #tpu.memory_space<vmem>>, vector<1x32xf32>
      %14 = vector.broadcast %13 : vector<1x32xf32> to vector<40x32xf32>
      %15 = arith.addf %12, %14 : vector<40x32xf32>
      %c0_14 = arith.constant 0 : index
      %c0_15 = arith.constant 0 : index
      %16 = vector.load %arg6[%c0_14, %c0_15] : memref<40x32xf32, #tpu.memory_space<vmem>>, vector<40x32xf32>
      %17 = arith.addf %15, %16 : vector<40x32xf32>
      %c0_16 = arith.constant 0 : index
      %c0_17 = arith.constant 0 : index
      %18 = vector.load %arg7[%c0_16, %c0_17] : memref<40x32xf32, #tpu.memory_space<vmem>>, vector<40x32xf32>
      tpu.vector_store %arg7[%c0_16, %c0_17], %17 {strides = array<i32>} : memref<40x32xf32, #tpu.memory_space<vmem>>, vector<40x32xf32>,
    } else {
    }
    return
  }
  func.func @transform_0(%arg0: i32, %arg1: i32, %arg2: i32) -> (i32, i32) {
    %c0_i32 = arith.constant 0 : i32
    return %arg0, %arg2 : i32, i32
  }
  func.func @transform_1(%arg0: i32, %arg1: i32, %arg2: i32) -> (i32, i32) {
    %c0_i32 = arith.constant 0 : i32
    return %arg2, %arg1 : i32, i32
  }
  func.func @transform_2(%arg0: i32, %arg1: i32, %arg2: i32) -> (i32, i32) {
    %c0_i32 = arith.constant 0 : i32
    %c0_i32_0 = arith.constant 0 : i32
    return %c0_i32, %arg1 : i32, i32
  }
  func.func @transform_3(%arg0: i32, %arg1: i32, %arg2: i32) -> (i32, i32) {
    %c0_i32 = arith.constant 0 : i32
    return %arg0, %arg1 : i32, i32
  }
  func.func @transform_4(%arg0: i32, %arg1: i32, %arg2: i32) -> (i32, i32) {
    %c0_i32 = arith.constant 0 : i32
    return %arg0, %arg1 : i32, i32
  }
}

</mosaic_0001>

<llo_original>
// kernel: vit_forward.12
$region0: #{vit_forward.12}
  #allocation0 [shape = 'u32[]', space=smem, size = 0x4, offset = 0x4, fixed_abs, tag = 'smem constant byte address 0x4 - core index']
  #allocation1 [shape = 'u32[72,128]{1,0:T(1,128)}', space=vmem, size = 0x9000, scoped, tag = 'internal scratch']
  #allocation2 [shape = 'bf16[40,32]{1,0:T(8,128)(2,1)}', space=vmem, size = 0x2800, scoped, tag = 'scratch operand']
  %s0 = inlined_call_operand.vmem [shape: f32[40,32], index: 0, kind: input, shape index: {}]
  %s1 = inlined_call_operand.vmem [shape: f32[1,32], index: 1, kind: input, shape index: {}]
  %s2 = inlined_call_operand.vmem [shape: f32[1,32], index: 2, kind: input, shape index: {}]
  %s3 = inlined_call_operand.vmem [shape: bf16[32,96], index: 3, kind: input, shape index: {}]
  %s4 = inlined_call_operand.vmem [shape: bf16[40,96], index: 4, kind: output, shape index: {}]
  %s5 = sld [smem:[#allocation0]]
  $region30: #{vit_forward.12} parent=0
    _
  %s7 = ssub.s32 1, %s5
  %s8 = scalar_select 0, %s7, %s5
  // Predicated region
  $region2: #{vit_forward.12} parent=0 // pred_check
    _
  $region3: #{vit_forward.12} parent=0 // pred_check_branch
    %10 = sbr.rel (0) target = $region5
  $region4: #{vit_forward.12} parent=0 // pred_region
    _
  $region5: #{vit_forward.12} parent=0 // pred_fallthru
    _
  // Predicated region
  $region6: #{vit_forward.12} parent=0 // pred_check
    _
  $region7: #{vit_forward.12} parent=0 // pred_check_branch
    %12 = sbr.rel (0) target = $region9
  $region8: #{vit_forward.12} parent=0 // pred_region
    _
  $region9: #{vit_forward.12} parent=0 // pred_fallthru
    _
  // Predicated region
  $region10: #{vit_forward.12} parent=0 // pred_check
    _
  $region11: #{vit_forward.12} parent=0 // pred_check_branch
    %14 = sbr.rel (0) target = $region13
  $region12: #{vit_forward.12} parent=0 // pred_region
    _
  $region13: #{vit_forward.12} parent=0 // pred_fallthru
    _
  // Predicated region
  $region14: #{vit_forward.12} parent=0 // pred_check
    _
  $region15: #{vit_forward.12} parent=0 // pred_check_branch
    %16 = sbr.rel (0) target = $region17
  $region16: #{vit_forward.12} parent=0 // pred_region
    _
  $region17: #{vit_forward.12} parent=0 // pred_fallthru
    _
  %p18 = scmp.eq.s32.totalorder 0, 0
  // Predicated region
  $region18: #{vit_forward.12} parent=0 // pred_check
    %p19 = pneg %p18
  $region19: #{vit_forward.12} parent=0 // pred_check_branch
    %21 = sbr.rel (%p19) target = $region21
  $region20: #{vit_forward.12} parent=0 // pred_region
    %v22 = vld [vmem:[%s0] sm:$0xff]
    %v23 = vld [vmem:[%s0 + $0x8] sm:$0xff]
    %v24 = vld [vmem:[%s0 + $0x10] sm:$0xff]
    %v25 = vld [vmem:[%s0 + $0x18] sm:$0xff]
    %v26 = vld [vmem:[%s0 + $0x20] sm:$0xff]
    %vm27 = vcmask 261120
    %v28 = vsel %vm27, %v22, 0.0
    %29 = vadd.xlane.f32.xlu0 %v28
    %v30 = vpop.xlane.xlu0 %29
    %v31 = vsel %vm27, %v23, 0.0
    %32 = vadd.xlane.f32.xlu0 %v31
    %v33 = vpop.xlane.xlu0 %32
    %v34 = vsel %vm27, %v24, 0.0
    %35 = vadd.xlane.f32.xlu0 %v34
    %v36 = vpop.xlane.xlu0 %35
    %v37 = vsel %vm27, %v25, 0.0
    %38 = vadd.xlane.f32.xlu0 %v37
    %v39 = vpop.xlane.xlu0 %38
    %v40 = vsel %vm27, %v26, 0.0
    %41 = vadd.xlane.f32.xlu0 %v40
    %v42 = vpop.xlane.xlu0 %41
    %v43 = vrcp.pop 32.0
    %v44 = vmul.f32 32.0, %v43
    %v45 = vsub.f32 1.0, %v44
    %v46 = vmul.f32 %v43, %v45
    %v47 = vadd.f32 %v43, %v46
    %vm48 = vweird.f32 %v43
    %v49 = vsel %vm48, %v43, %v47
    %v50 = vmul.f32 %v30, %v49
    %v51 = vmul.f32 %v33, %v49
    %v52 = vmul.f32 %v36, %v49
    %v53 = vmul.f32 %v39, %v49
    %v54 = vmul.f32 %v42, %v49
    %v55 = vsub.f32 %v22, %v50
    %v56 = vsub.f32 %v23, %v51
    %v57 = vsub.f32 %v24, %v52
    %v58 = vsub.f32 %v25, %v53
    %v59 = vsub.f32 %v26, %v54
    %v60 = vmul.f32 %v55, %v55
    %v61 = vmul.f32 %v56, %v56
    %v62 = vmul.f32 %v57, %v57
    %v63 = vmul.f32 %v58, %v58
    %v64 = vmul.f32 %v59, %v59
    %v65 = vsel %vm27, %v60, 0.0
    %66 = vadd.xlane.f32.xlu0 %v65
    %v67 = vpop.xlane.xlu0 %66
    %v68 = vsel %vm27, %v61, 0.0
    %69 = vadd.xlane.f32.xlu0 %v68
    %v70 = vpop.xlane.xlu0 %69
    %v71 = vsel %vm27, %v62, 0.0
    %72 = vadd.xlane.f32.xlu0 %v71
    %v73 = vpop.xlane.xlu0 %72
    %v74 = vsel %vm27, %v63, 0.0
    %75 = vadd.xlane.f32.xlu0 %v74
    %v76 = vpop.xlane.xlu0 %75
    %v77 = vsel %vm27, %v64, 0.0
    %78 = vadd.xlane.f32.xlu0 %v77
    %v79 = vpop.xlane.xlu0 %78
    %v80 = vmul.f32 %v67, %v49
    %v81 = vmul.f32 %v70, %v49
    %v82 = vmul.f32 %v73, %v49
    %v83 = vmul.f32 %v76, %v49
    %v84 = vmul.f32 %v79, %v49
    %v85 = vadd.f32 %v80, 1e-06
    %v86 = vadd.f32 %v81, 1e-06
    %v87 = vadd.f32 %v82, 1e-06
    %v88 = vadd.f32 %v83, 1e-06
    %v89 = vadd.f32 %v84, 1e-06
    %v90 = vrsqrt.pop %v85
    %v91 = vmul.f32 %v90, %v85
    %v92 = vmul.f32 %v91, %v90
    %v93 = vmul.f32 0.5, %v92
    %v94 = vsub.f32 1.5, %v93
    %v95 = vmul.f32 %v90, %v94
    %vm96 = vweird.f32 %v85
    %vm97 = vweird.f32 %v90
    %vm98 = vmor %vm96, %vm97
    %v99 = vsel %vm98, %v90, %v95
    %v100 = vrsqrt.pop %v86
    %v101 = vmul.f32 %v100, %v86
    %v102 = vmul.f32 %v101, %v100
    %v103 = vmul.f32 0.5, %v102
    %v104 = vsub.f32 1.5, %v103
    %v105 = vmul.f32 %v100, %v104
    %vm106 = vweird.f32 %v86
    %vm107 = vweird.f32 %v100
    %vm108 = vmor %vm106, %vm107
    %v109 = vsel %vm108, %v100, %v105
    %v110 = vrsqrt.pop %v87
    %v111 = vmul.f32 %v110, %v87
    %v112 = vmul.f32 %v111, %v110
    %v113 = vmul.f32 0.5, %v112
    %v114 = vsub.f32 1.5, %v113
    %v115 = vmul.f32 %v110, %v114
    %vm116 = vweird.f32 %v87
    %vm117 = vweird.f32 %v110
    %vm118 = vmor %vm116, %vm117
    %v119 = vsel %vm118, %v110, %v115
    %v120 = vrsqrt.pop %v88
    %v121 = vmul.f32 %v120, %v88
    %v122 = vmul.f32 %v121, %v120
    %v123 = vmul.f32 0.5, %v122
    %v124 = vsub.f32 1.5, %v123
    %v125 = vmul.f32 %v120, %v124
    %vm126 = vweird.f32 %v88
    %vm127 = vweird.f32 %v120
    %vm128 = vmor %vm126, %vm127
    %v129 = vsel %vm128, %v120, %v125
    %v130 = vrsqrt.pop %v89
    %v131 = vmul.f32 %v130, %v89
    %v132 = vmul.f32 %v131, %v130
    %v133 = vmul.f32 0.5, %v132
    %v134 = vsub.f32 1.5, %v133
    %v135 = vmul.f32 %v130, %v134
    %vm136 = vweird.f32 %v89
    %vm137 = vweird.f32 %v130
    %vm138 = vmor %vm136, %vm137
    %v139 = vsel %vm138, %v130, %v135
    %v140 = vmul.f32 %v55, %v99
    %v141 = vmul.f32 %v56, %v109
    %v142 = vmul.f32 %v57, %v119
    %v143 = vmul.f32 %v58, %v129
    %v144 = vmul.f32 %v59, %v139
    %v145 = vld [vmem:[%s1] sm:$0x1]
    %v147 = vperm.slane %v145, 0
    %v149 = vmul.f32 %v140, %v147
    %v150 = vmul.f32 %v141, %v147
    %v151 = vmul.f32 %v142, %v147
    %v152 = vmul.f32 %v143, %v147
    %v153 = vmul.f32 %v144, %v147
    %v154 = vld [vmem:[%s2] sm:$0x1]
    %v156 = vperm.slane %v154, 0
    %v158 = vadd.f32 %v149, %v156
    %v159 = vadd.f32 %v150, %v156
    %v160 = vadd.f32 %v151, %v156
    %v161 = vadd.f32 %v152, %v156
    %v162 = vadd.f32 %v153, %v156
    %v163 = vpack.c.bf16 %v158, %v158
    %v164 = vpack.c.bf16 %v159, %v159
    %v165 = vpack.c.bf16 %v160, %v160
    %v166 = vpack.c.bf16 %v161, %v161
    %v167 = vpack.c.bf16 %v162, %v162
    %vm168 = vcmask 257024
    %169 = vst.msk [vmem:[#allocation2] sm:$0xf] %vm168, %v163
    %170 = vst.msk [vmem:[#allocation2 + $0x4] sm:$0xf] %vm168, %v164
    %171 = vst.msk [vmem:[#allocation2 + $0x8] sm:$0xf] %vm168, %v165
    %172 = vst.msk [vmem:[#allocation2 + $0xc] sm:$0xf] %vm168, %v166
    %173 = vst.msk [vmem:[#allocation2 + $0x10] sm:$0xf] %vm168, %v167
  $region21: #{vit_forward.12} parent=0 // pred_fallthru
    _
  %v174 = vld [vmem:[#allocation2] sm:$0xf]
  %v175 = vld [vmem:[#allocation2 + $0x4] sm:$0xf]
  %v176 = vld [vmem:[#allocation2 + $0x8] sm:$0xf]
  %v177 = vld [vmem:[#allocation2 + $0xc] sm:$0xf]
  %v178 = vld [vmem:[#allocation2 + $0x10] sm:$0xf]
  %v179 = vld [vmem:[%s3] sm:$0xf]
  %v180 = vld [vmem:[%s3 + $0x4] sm:$0xf]
  %v181 = vld [vmem:[%s3 + $0x8] sm:$0xf]
  %v182 = vld [vmem:[%s3 + $0xc] sm:$0xf]
  %v188 = vunpack.c.l.b16 %v174
  %v189 = vunpack.c.l.b16 %v175
  %v190 = vunpack.c.l.b16 %v176
  %v191 = vunpack.c.l.b16 %v177
  %v192 = vunpack.c.l.b16 %v178
  %v193 = vpack.c.b16 %v189, %v188
  %v194 = vpack.c.b16 %v191, %v190
  %v195 = vpack.c.b16 %v192, %v192
  %v200 = vunpack.c.l.b16 %v179
  %v201 = vunpack.c.l.b16 %v180
  %v202 = vunpack.c.l.b16 %v181
  %v203 = vunpack.c.l.b16 %v182
  %v204 = vpack.c.b16 %v201, %v200
  %v205 = vpack.c.b16 %v203, %v202
  %vm208 = vcmask 261120
  %v210 = vsel %vm208, %v193, 0
  %v213 = vsel %vm208, %v194, 0
  %v216 = vsel %vm208, %v195, 0
  %218 = vmatpush.bf16.msra.mxu0 0
  %219 = vmatpush.bf16.msra.mxu0 0
  %220 = vmatpush.bf16.msra.mxu0 0
  %221 = vmatpush.bf16.msra.mxu0 0
  %222 = vmatpush.bf16.msra.mxu0 0
  %223 = vmatpush.bf16.msra.mxu0 0
  %224 = vmatpush.bf16.msra.mxu0 %v205
  %225 = vmatpush.bf16.msra.mxu0 %v204
  %226 = vmatmul.bf16.gmra.mxu0 %v210
  %v227 = vpop.f32.mrf.mxu0
  %v228 = vadd.f32 0.0, %v227
  %v229 = vpop.f32.mrf.mxu0
  %v230 = vadd.f32 0.0, %v229
  %231 = vmatmul.bf16.gmra.mxu0 %v213
  %v232 = vpop.f32.mrf.mxu0
  %v233 = vadd.f32 0.0, %v232
  %v234 = vpop.f32.mrf.mxu0
  %v235 = vadd.f32 0.0, %v234
  %236 = vmatmul.bf16.gmra.mxu0 %v216
  %v237 = vpop.f32.mrf.mxu0
  %v238 = vadd.f32 0.0, %v237
  %v239 = vpop.f32.mrf.mxu0
  %240 = vdwg.mxu0
  %v241 = vpack.c.bf16 %v228, %v228
  %v242 = vpack.c.bf16 %v230, %v230
  %v243 = vpack.c.bf16 %v233, %v233
  %v244 = vpack.c.bf16 %v235, %v235
  %v245 = vpack.c.bf16 %v238, %v238
  %vm246 = vcmask 781312
  %247 = vst.msk [vmem:[%s4] sm:$0xf] %vm246, %v241
  %248 = vst.msk [vmem:[%s4 + $0x4] sm:$0xf] %vm246, %v242
  %249 = vst.msk [vmem:[%s4 + $0x8] sm:$0xf] %vm246, %v243
  %250 = vst.msk [vmem:[%s4 + $0xc] sm:$0xf] %vm246, %v244
  %251 = vst.msk [vmem:[%s4 + $0x10] sm:$0xf] %vm246, %v245
  // Predicated region
  $region22: #{vit_forward.12} parent=0 // pred_check
    _
  $region23: #{vit_forward.12} parent=0 // pred_check_branch
    %253 = sbr.rel (0) target = $region25
  $region24: #{vit_forward.12} parent=0 // pred_region
    _
  $region25: #{vit_forward.12} parent=0 // pred_fallthru
    _
  // Predicated region
  $region26: #{vit_forward.12} parent=0 // pred_check
    _
  $region27: #{vit_forward.12} parent=0 // pred_check_branch
    %255 = sbr.rel (0) target = $region29
  $region28: #{vit_forward.12} parent=0 // pred_region
    _
  $region29: #{vit_forward.12} parent=0 // pred_fallthru
    _

// kernel: vit_forward.11
$region0: #{vit_forward.11}
  #allocation0 [shape = 'u32[]', space=smem, size = 0x4, offset = 0x4, fixed_abs, tag = 'smem constant byte address 0x4 - core index']
  #allocation1 [shape = 'u32[72,128]{1,0:T(1,128)}', space=vmem, size = 0x9000, scoped, tag = 'internal scratch']
  %s0 = inlined_call_operand.vmem [shape: f32[2,16,48], index: 0, kind: input, shape index: {}]
  %s1 = inlined_call_operand.vmem [shape: bf16[48,32], index: 1, kind: input, shape index: {}]
  %s2 = inlined_call_operand.vmem [shape: f32[1,32], index: 2, kind: input, shape index: {}]
  %s3 = inlined_call_operand.vmem [shape: f32[16,32], index: 3, kind: input, shape index: {}]
  %s4 = inlined_call_operand.vmem [shape: f32[2,16,32], index: 4, kind: output, shape index: {}]
  %s5 = sld [smem:[#allocation0]]
  $region49: #{vit_forward.11} parent=0
    _
  %s7 = ssub.s32 1, %s5
  %s8 = scalar_select 0, %s7, %s5
  loop: start=0, step=1, limit=4
  $region2: #{vit_forward.11} parent=0 // loop_pre_header
    _
  $region3: #{vit_forward.11} parent=0 // loop_header
    %s10 = sphi 0, %s14
    %p11 = scmp.ge.s32.totalorder %s10, 4
    %s20 = sphi 0, %s22
    %s23 = sphi 0, %s20
    %s24 = sphi 0, %s23
    %s40 = sphi 0, %s24
    %s44 = sphi 0, %s44
    %s46 = sphi 0, %s44
    %s47 = sphi 0, %s46
    %s61 = sphi 0, %s47
    %s65 = sphi 0, %s65
    %s67 = sphi 0, %s65
    %s68 = sphi 0, %s67
    %s82 = sphi 0, %s68
    %s86 = sphi 0, %s86
    %s88 = sphi 0, %s86
    %s89 = sphi 0, %s88
    %s103 = sphi 0, %s89
    %s109 = sphi 0, %s111
    %s112 = sphi 0, %s109
    %s113 = sphi 0, %s112
    %s129 = sphi 0, %s113
  $region4: #{vit_forward.11} parent=0 // loop_header_branch
    %13 = sbr.rel (%p11) target = $region8
  $region5: #{vit_forward.11} parent=0 // loop_body
    %s15 = ssub.s32 %s10, 1
    %s16 = ssub.s32 %s10, 2
    %s17 = sadd.s32 %s10, 1
    %s18 = ssub.s32 %s10, %s17
    %p19 = scmp.eq.s32.totalorder %s18, 0
    %s21 = sadd.s32 %s20, 1
    %s22 = scalar_select %p19, %s20, %s21
    %p25 = pneg %p19
    %p26 = scmp.eq.s32.totalorder %s10, 1
    %p27 = por %p25, %p26
    %p28 = scmp.ne.s32.totalorder %s20, %s23
    %p29 = scmp.eq.s32.totalorder %s10, 0
    %p30 = por %p28, %p29
    %p31 = scmp.ne.s32.totalorder %s20, %s23
    %p32 = scmp.eq.s32.totalorder %s15, 1
    %p33 = por %p31, %p32
    %p34 = scmp.ne.s32.totalorder %s23, %s24
    %p35 = scmp.eq.s32.totalorder %s15, 0
    %p36 = por %p34, %p35
    %p37 = scmp.ne.s32.totalorder %s23, %s24
    %p38 = scmp.eq.s32.totalorder %s16, 1
    %p39 = por %p37, %p38
    %p41 = scmp.ne.s32.totalorder %s24, %s40
    %p42 = scmp.eq.s32.totalorder %s16, 0
    %p43 = por %p41, %p42
    %s45 = sadd.s32 %s44, 1
    %p48 = scmp.eq.s32.totalorder %s10, 1
    %p49 = scmp.ne.s32.totalorder %s44, %s46
    %p50 = scmp.eq.s32.totalorder %s10, 0
    %p51 = por %p49, %p50
    %p52 = scmp.ne.s32.totalorder %s44, %s46
    %p53 = scmp.eq.s32.totalorder %s15, 1
    %p54 = por %p52, %p53
    %p55 = scmp.ne.s32.totalorder %s46, %s47
    %p56 = scmp.eq.s32.totalorder %s15, 0
    %p57 = por %p55, %p56
    %p58 = scmp.ne.s32.totalorder %s46, %s47
    %p59 = scmp.eq.s32.totalorder %s16, 1
    %p60 = por %p58, %p59
    %p62 = scmp.ne.s32.totalorder %s47, %s61
    %p63 = scmp.eq.s32.totalorder %s16, 0
    %p64 = por %p62, %p63
    %s66 = sadd.s32 %s65, 1
    %p69 = scmp.eq.s32.totalorder %s10, 1
    %p70 = scmp.ne.s32.totalorder %s65, %s67
    %p71 = scmp.eq.s32.totalorder %s10, 0
    %p72 = por %p70, %p71
    %p73 = scmp.ne.s32.totalorder %s65, %s67
    %p74 = scmp.eq.s32.totalorder %s15, 1
    %p75 = por %p73, %p74
    %p76 = scmp.ne.s32.totalorder %s67, %s68
    %p77 = scmp.eq.s32.totalorder %s15, 0
    %p78 = por %p76, %p77
    %p79 = scmp.ne.s32.totalorder %s67, %s68
    %p80 = scmp.eq.s32.totalorder %s16, 1
    %p81 = por %p79, %p80
    %p83 = scmp.ne.s32.totalorder %s68, %s82
    %p84 = scmp.eq.s32.totalorder %s16, 0
    %p85 = por %p83, %p84
    %s87 = sadd.s32 %s86, 1
    %p90 = scmp.eq.s32.totalorder %s10, 1
    %p91 = scmp.ne.s32.totalorder %s86, %s88
    %p92 = scmp.eq.s32.totalorder %s10, 0
    %p93 = por %p91, %p92
    %p94 = scmp.ne.s32.totalorder %s86, %s88
    %p95 = scmp.eq.s32.totalorder %s15, 1
    %p96 = por %p94, %p95
    %p97 = scmp.ne.s32.totalorder %s88, %s89
    %p98 = scmp.eq.s32.totalorder %s15, 0
    %p99 = por %p97, %p98
    %p100 = scmp.ne.s32.totalorder %s88, %s89
    %p101 = scmp.eq.s32.totalorder %s16, 1
    %p102 = por %p100, %p101
    %p104 = scmp.ne.s32.totalorder %s89, %s103
    %p105 = scmp.eq.s32.totalorder %s16, 0
    %p106 = por %p104, %p105
    %s107 = ssub.s32 %s10, %s17
    %p108 = scmp.eq.s32.totalorder %s107, 0
    %s110 = sadd.s32 %s109, 1
    %s111 = scalar_select %p108, %s109, %s110
    %p114 = pneg %p108
    %p115 = scmp.eq.s32.totalorder %s10, 1
    %p116 = por %p114, %p115
    %p117 = scmp.ne.s32.totalorder %s109, %s112
    %p118 = scmp.eq.s32.totalorder %s10, 0
    %p119 = por %p117, %p118
    %p120 = scmp.ne.s32.totalorder %s109, %s112
    %p121 = scmp.eq.s32.totalorder %s15, 1
    %p122 = por %p120, %p121
    %p123 = scmp.ne.s32.totalorder %s112, %s113
    %p124 = scmp.eq.s32.totalorder %s15, 0
    %p125 = por %p123, %p124
    %p126 = scmp.ne.s32.totalorder %s112, %s113
    %p127 = scmp.eq.s32.totalorder %s16, 1
    %p128 = por %p126, %p127
    %p130 = scmp.ne.s32.totalorder %s113, %s129
    %p131 = scmp.eq.s32.totalorder %s16, 0
    %p132 = por %p130, %p131
    %p133 = scmp.le.s32.totalorder 1, %s10
    %p134 = scmp.lt.s32.totalorder %s10, 3
    %p135 = pnand %p133, %p134
    %p136 = pneg %p135
    // Predicated region
    $region9: #{vit_forward.11} parent=5 // pred_check
      _
    $region10: #{vit_forward.11} parent=5 // pred_check_branch
      %138 = sbr.rel (%p135) target = $region12
    $region11: #{vit_forward.11} parent=5 // pred_region
      %s139 = ssub.s32 %s10, 1
      // Predicated region
      $region13: #{vit_forward.11} parent=11 // pred_check
        %p140 = pneg %p57
      $region14: #{vit_forward.11} parent=11 // pred_check_branch
        %142 = sbr.rel (%p140) target = $region16
      $region15: #{vit_forward.11} parent=11 // pred_region
        _
      $region16: #{vit_forward.11} parent=11 // pred_fallthru
        _
      // Predicated region
      $region17: #{vit_forward.11} parent=11 // pred_check
        %p143 = pneg %p78
      $region18: #{vit_forward.11} parent=11 // pred_check_branch
        %145 = sbr.rel (%p143) target = $region20
      $region19: #{vit_forward.11} parent=11 // pred_region
        _
      $region20: #{vit_forward.11} parent=11 // pred_fallthru
        _
      // Predicated region
      $region21: #{vit_forward.11} parent=11 // pred_check
        %p146 = pneg %p99
      $region22: #{vit_forward.11} parent=11 // pred_check_branch
        %148 = sbr.rel (%p146) target = $region24
      $region23: #{vit_forward.11} parent=11 // pred_region
        _
      $region24: #{vit_forward.11} parent=11 // pred_fallthru
        _
    $region12: #{vit_forward.11} parent=5 // pred_fallthru
      _
    %p149 = scmp.lt.s32.totalorder %s10, 2
    // Predicated region
    $region25: #{vit_forward.11} parent=5 // pred_check
      %p150 = pneg %p149
    $region26: #{vit_forward.11} parent=5 // pred_check_branch
      %152 = sbr.rel (%p150) target = $region28
    $region27: #{vit_forward.11} parent=5 // pred_region
      // Predicated region
      $region29: #{vit_forward.11} parent=27 // pred_check
        %p153 = pneg %p30
      $region30: #{vit_forward.11} parent=27 // pred_check_branch
        %155 = sbr.rel (%p153) target = $region32
      $region31: #{vit_forward.11} parent=27 // pred_region
        %p156 = scmp.lt.s32.totalorder %s10, 1
        %s157 = scalar_select %p156, %s10, 1
        %s158 = smul.addr %s157, 2
        %s159 = smul.addr %s158, 8
        %s160 = scalar_lea.vmem %s0, %s159
      $region32: #{vit_forward.11} parent=27 // pred_fallthru
        _
    $region28: #{vit_forward.11} parent=5 // pred_fallthru
      _
    %p161 = scmp.le.s32.totalorder 1, %s10
    %p162 = scmp.lt.s32.totalorder %s10, 3
    %p163 = pnand %p161, %p162
    %p164 = pneg %p163
    // Predicated region
    $region33: #{vit_forward.11} parent=5 // pred_check
      _
    $region34: #{vit_forward.11} parent=5 // pred_check_branch
      %166 = sbr.rel (%p163) target = $region36
    $region35: #{vit_forward.11} parent=5 // pred_region
      %s167 = ssub.s32 %s10, 1
      %p168 = scmp.lt.s32.totalorder %s15, 1
      %s169 = scalar_select %p168, %s15, 1
      %s170 = smul.addr %s169, 2
      %s171 = smul.addr %s170, 8
      %s172 = scalar_lea.vmem %s0, %s171
      %p173 = pneg %p36
      %p174 = pneg %p33
      %p175 = pneg %p57
      %p176 = pneg %p54
      %p177 = pneg %p78
      %p178 = pneg %p75
      %p179 = pneg %p99
      %p180 = pneg %p96
      %p181 = pneg %p125
      %p182 = pneg %p122
      %p183 = scmp.lt.s32.totalorder %s15, 1
      %s184 = scalar_select %p183, %s15, 1
      %s185 = smul.addr %s184, 2
      %s186 = smul.addr %s185, 8
      %s187 = scalar_lea.vmem %s4, %s186
      %p188 = scmp.lt.s32.totalorder %s15, 1
      %s189 = scalar_select %p188, %s15, 1
      %s190 = smul.addr %s189, 2
      %s191 = smul.addr %s190, 8
      %s192 = scalar_lea.vmem %s0, %s191
      %p193 = scmp.lt.s32.totalorder %s15, 1
      %s194 = scalar_select %p193, %s15, 1
      %s195 = smul.addr %s194, 2
      %s196 = smul.addr %s195, 8
      %s197 = scalar_lea.vmem %s4, %s196
      %v199 = vld [vmem:[%s192] sm:$0xff]
      %v200 = vld [vmem:[%s192 + $0x8] sm:$0xff]
      %v201 = vpack.c.bf16 %v200, %v199
      %v202 = vld [vmem:[%s1] sm:$0xf]
      %v203 = vld [vmem:[%s1 + $0x4] sm:$0xf]
      %v204 = vld [vmem:[%s1 + $0x8] sm:$0xf]
      %v205 = vld [vmem:[%s1 + $0xc] sm:$0xf]
      %v206 = vld [vmem:[%s1 + $0x10] sm:$0xf]
      %v207 = vld [vmem:[%s1 + $0x14] sm:$0xf]
      %v208 = vld [vmem:[%s2] sm:$0x1]
      %v210 = vperm.slane %v208, 0
      %v218 = vunpack.c.l.b16 %v202
      %v219 = vunpack.c.l.b16 %v203
      %v220 = vunpack.c.l.b16 %v204
      %v221 = vunpack.c.l.b16 %v205
      %v222 = vunpack.c.l.b16 %v206
      %v223 = vunpack.c.l.b16 %v207
      %v224 = vpack.c.b16 %v219, %v218
      %v225 = vpack.c.b16 %v221, %v220
      %v226 = vpack.c.b16 %v223, %v222
      %vm230 = vcmask 392192
      %v232 = vsel %vm230, %v201, 0
      %234 = vmatpush.bf16.msra.mxu0 0
      %235 = vmatpush.bf16.msra.mxu0 0
      %236 = vmatpush.bf16.msra.mxu0 0
      %237 = vmatpush.bf16.msra.mxu0 0
      %238 = vmatpush.bf16.msra.mxu0 0
      %239 = vmatpush.bf16.msra.mxu0 %v226
      %240 = vmatpush.bf16.msra.mxu0 %v225
      %241 = vmatpush.bf16.msra.mxu0 %v224
      %242 = vmatmul.bf16.gmra.mxu0 %v232
      %v243 = vpop.f32.mrf.mxu0
      %v244 = vadd.f32 %v210, %v243
      %v245 = vpop.f32.mrf.mxu0
      %v246 = vadd.f32 %v210, %v245
      %247 = vdwg.mxu0
      %v248 = vld [vmem:[%s3] sm:$0xff]
      %v249 = vld [vmem:[%s3 + $0x8] sm:$0xff]
      %v250 = vadd.f32 %v244, %v248
      %v251 = vadd.f32 %v246, %v249
      %vm252 = vcmask 261120
      %253 = vst.msk [vmem:[%s197] sm:$0xff] %vm252, %v250
      %254 = vst.msk [vmem:[%s197 + $0x8] sm:$0xff] %vm252, %v251
      %p255 = scmp.lt.s32.totalorder %s15, 1
      %s256 = scalar_select %p255, %s15, 1
      %s257 = smul.addr %s256, 2
      %s258 = smul.addr %s257, 8
      %s259 = scalar_lea.vmem %s4, %s258
      // Predicated region
      $region37: #{vit_forward.11} parent=35 // pred_check
        %p260 = pneg %p122
      $region38: #{vit_forward.11} parent=35 // pred_check_branch
        %262 = sbr.rel (%p260) target = $region40
      $region39: #{vit_forward.11} parent=35 // pred_region
        _
      $region40: #{vit_forward.11} parent=35 // pred_fallthru
        _
    $region36: #{vit_forward.11} parent=5 // pred_fallthru
      _
    %p263 = scmp.le.s32.totalorder 2, %s10
    // Predicated region
    $region41: #{vit_forward.11} parent=5 // pred_check
      %p264 = pneg %p263
    $region42: #{vit_forward.11} parent=5 // pred_check_branch
      %266 = sbr.rel (%p264) target = $region44
    $region43: #{vit_forward.11} parent=5 // pred_region
      %s267 = ssub.s32 %s10, 2
      // Predicated region
      $region45: #{vit_forward.11} parent=43 // pred_check
        %p268 = pneg %p128
      $region46: #{vit_forward.11} parent=43 // pred_check_branch
        %270 = sbr.rel (%p268) target = $region48
      $region47: #{vit_forward.11} parent=43 // pred_region
        %p271 = scmp.lt.s32.totalorder %s16, 1
        %s272 = scalar_select %p271, %s16, 1
        %s273 = smul.addr %s272, 2
        %s274 = smul.addr %s273, 8
        %s275 = scalar_lea.vmem %s4, %s274
      $region48: #{vit_forward.11} parent=43 // pred_fallthru
        _
    $region44: #{vit_forward.11} parent=5 // pred_fallthru
      _
  $region6: #{vit_forward.11} parent=0 // loop_footer
    %s14 = sadd.s32 1, %s10
  $region7: #{vit_forward.11} parent=0 // loop_footer_branch
    %9 = sbr.rel target = $region3
  $region8: #{vit_forward.11} parent=0 // loop_exit
    _

// kernel: vit_forward.13
$region0: #{vit_forward.13}
  #allocation0 [shape = 'u32[]', space=smem, size = 0x4, offset = 0x4, fixed_abs, tag = 'smem constant byte address 0x4 - core index']
  #allocation1 [shape = 'u32[72,128]{1,0:T(1,128)}', space=vmem, size = 0x9000, scoped, tag = 'internal scratch']
  %s0 = inlined_call_operand.vmem [shape: bf16[2,17,96], index: 0, kind: input, shape index: {}]
  %s1 = inlined_call_operand.vmem [shape: bf16[2,17,32], index: 1, kind: output, shape index: {}]
  %s2 = sld [smem:[#allocation0]]
  $region37: #{vit_forward.13} parent=0
    _
  %s4 = ssub.s32 1, %s2
  %s5 = scalar_select 0, %s4, %s2
  loop: start=0, step=1, limit=4
  $region2: #{vit_forward.13} parent=0 // loop_pre_header
    _
  $region3: #{vit_forward.13} parent=0 // loop_header
    %s7 = sphi 0, %s11
    %p8 = scmp.ge.s32.totalorder %s7, 4
    %s17 = sphi 0, %s19
    %s20 = sphi 0, %s17
    %s21 = sphi 0, %s20
    %s37 = sphi 0, %s21
    %s43 = sphi 0, %s45
    %s46 = sphi 0, %s43
    %s47 = sphi 0, %s46
    %s63 = sphi 0, %s47
  $region4: #{vit_forward.13} parent=0 // loop_header_branch
    %10 = sbr.rel (%p8) target = $region8
  $region5: #{vit_forward.13} parent=0 // loop_body
    %s12 = ssub.s32 %s7, 1
    %s13 = ssub.s32 %s7, 2
    %s14 = sadd.s32 %s7, 1
    %s15 = ssub.s32 %s7, %s14
    %p16 = scmp.eq.s32.totalorder %s15, 0
    %s18 = sadd.s32 %s17, 1
    %s19 = scalar_select %p16, %s17, %s18
    %p22 = pneg %p16
    %p23 = scmp.eq.s32.totalorder %s7, 1
    %p24 = por %p22, %p23
    %p25 = scmp.ne.s32.totalorder %s17, %s20
    %p26 = scmp.eq.s32.totalorder %s7, 0
    %p27 = por %p25, %p26
    %p28 = scmp.ne.s32.totalorder %s17, %s20
    %p29 = scmp.eq.s32.totalorder %s12, 1
    %p30 = por %p28, %p29
    %p31 = scmp.ne.s32.totalorder %s20, %s21
    %p32 = scmp.eq.s32.totalorder %s12, 0
    %p33 = por %p31, %p32
    %p34 = scmp.ne.s32.totalorder %s20, %s21
    %p35 = scmp.eq.s32.totalorder %s13, 1
    %p36 = por %p34, %p35
    %p38 = scmp.ne.s32.totalorder %s21, %s37
    %p39 = scmp.eq.s32.totalorder %s13, 0
    %p40 = por %p38, %p39
    %s41 = ssub.s32 %s7, %s14
    %p42 = scmp.eq.s32.totalorder %s41, 0
    %s44 = sadd.s32 %s43, 1
    %s45 = scalar_select %p42, %s43, %s44
    %p48 = pneg %p42
    %p49 = scmp.eq.s32.totalorder %s7, 1
    %p50 = por %p48, %p49
    %p51 = scmp.ne.s32.totalorder %s43, %s46
    %p52 = scmp.eq.s32.totalorder %s7, 0
    %p53 = por %p51, %p52
    %p54 = scmp.ne.s32.totalorder %s43, %s46
    %p55 = scmp.eq.s32.totalorder %s12, 1
    %p56 = por %p54, %p55
    %p57 = scmp.ne.s32.totalorder %s46, %s47
    %p58 = scmp.eq.s32.totalorder %s12, 0
    %p59 = por %p57, %p58
    %p60 = scmp.ne.s32.totalorder %s46, %s47
    %p61 = scmp.eq.s32.totalorder %s13, 1
    %p62 = por %p60, %p61
    %p64 = scmp.ne.s32.totalorder %s47, %s63
    %p65 = scmp.eq.s32.totalorder %s13, 0
    %p66 = por %p64, %p65
    %p67 = scmp.le.s32.totalorder 1, %s7
    %p68 = scmp.lt.s32.totalorder %s7, 3
    %p69 = pnand %p67, %p68
    %p70 = pneg %p69
    // Predicated region
    $region9: #{vit_forward.13} parent=5 // pred_check
      _
    $region10: #{vit_forward.13} parent=5 // pred_check_branch
      %72 = sbr.rel (%p69) target = $region12
    $region11: #{vit_forward.13} parent=5 // pred_region
      %s73 = ssub.s32 %s7, 1
    $region12: #{vit_forward.13} parent=5 // pred_fallthru
      _
    %p74 = scmp.lt.s32.totalorder %s7, 2
    // Predicated region
    $region13: #{vit_forward.13} parent=5 // pred_check
      %p75 = pneg %p74
    $region14: #{vit_forward.13} parent=5 // pred_check_branch
      %77 = sbr.rel (%p75) target = $region16
    $region15: #{vit_forward.13} parent=5 // pred_region
      // Predicated region
      $region17: #{vit_forward.13} parent=15 // pred_check
        %p78 = pneg %p27
      $region18: #{vit_forward.13} parent=15 // pred_check_branch
        %80 = sbr.rel (%p78) target = $region20
      $region19: #{vit_forward.13} parent=15 // pred_region
        %p81 = scmp.lt.s32.totalorder %s7, 1
        %s82 = scalar_select %p81, %s7, 1
        %s83 = smul.addr %s82, 3
        %s84 = smul.addr %s83, 4
        %s85 = scalar_lea.vmem %s0, %s84
      $region20: #{vit_forward.13} parent=15 // pred_fallthru
        _
    $region16: #{vit_forward.13} parent=5 // pred_fallthru
      _
    %p86 = scmp.le.s32.totalorder 1, %s7
    %p87 = scmp.lt.s32.totalorder %s7, 3
    %p88 = pnand %p86, %p87
    %p89 = pneg %p88
    // Predicated region
    $region21: #{vit_forward.13} parent=5 // pred_check
      _
    $region22: #{vit_forward.13} parent=5 // pred_check_branch
      %91 = sbr.rel (%p88) target = $region24
    $region23: #{vit_forward.13} parent=5 // pred_region
      %s92 = ssub.s32 %s7, 1
      %p93 = scmp.lt.s32.totalorder %s12, 1
      %s94 = scalar_select %p93, %s12, 1
      %s95 = smul.addr %s94, 3
      %s96 = smul.addr %s95, 4
      %s97 = scalar_lea.vmem %s0, %s96
      %p98 = pneg %p33
      %p99 = pneg %p30
      %p100 = pneg %p59
      %p101 = pneg %p56
      %p102 = scmp.lt.s32.totalorder %s12, 1
      %s103 = scalar_select %p102, %s12, 1
      %s104 = smul.addr %s103, 3
      %s105 = smul.addr %s104, 4
      %s106 = scalar_lea.vmem %s1, %s105
      %p107 = scmp.lt.s32.totalorder %s12, 1
      %s108 = scalar_select %p107, %s12, 1
      %s109 = smul.addr %s108, 3
      %s110 = smul.addr %s109, 4
      %s111 = scalar_lea.vmem %s0, %s110
      %p112 = scmp.lt.s32.totalorder %s12, 1
      %s113 = scalar_select %p112, %s12, 1
      %s114 = smul.addr %s113, 3
      %s115 = smul.addr %s114, 4
      %s116 = scalar_lea.vmem %s1, %s115
      %v118 = vld [vmem:[%s111] sm:$0xf]
      %v119 = vld [vmem:[%s111 + $0x4] sm:$0xf]
      %v120 = vld [vmem:[%s111 + $0x8] sm:$0x1]
      %v124 = vunpack.c.l.b16 %v118
      %v125 = vunpack.c.l.b16 %v119
      %v126 = vunpack.c.l.b16 %v120
      %v127 = vpack.c.b16 %v125, %v124
      %v128 = vpack.c.b16 %v126, %v126
      %129 = vrot.lane.b32.xlu0 %v127, 96
      %v130 = vpop.permute.xlu0 %129
      %131 = vrot.lane.b32.xlu0 %v128, 96
      %v132 = vpop.permute.xlu0 %131
      %vm133 = vcmask 64512
      %v135 = vsel %vm133, %v127, 0
      %v138 = vsel %vm133, %v128, 0
      %v141 = vsel %vm133, %v130, 0
      %v144 = vsel %vm133, %v132, 0
      %146 = vmatpush.bf16.xpose.msra.mxu0 0
      %147 = vmatpush.bf16.xpose.msra.mxu0 0
      %148 = vmatpush.bf16.xpose.msra.mxu0 0
      %149 = vmatpush.bf16.xpose.msra.mxu0 0
      %150 = vmatpush.bf16.xpose.msra.mxu0 0
      %151 = vmatpush.bf16.xpose.msra.mxu0 0
      %152 = vmatpush.bf16.xpose.msra.mxu0 %v144
      %153 = vmatpush.bf16.xpose.msra.mxu0 %v141
      %154 = vmatmul.bf16.gmra.mxu0 %v135
      %v155 = vpop.f32.mrf.mxu0
      %v156 = vadd.f32 0.0, %v155
      %v157 = vpop.f32.mrf.mxu0
      %v158 = vadd.f32 0.0, %v157
      %159 = vmatmul.bf16.gmra.mxu0 %v138
      %v160 = vpop.f32.mrf.mxu0
      %v161 = vadd.f32 0.0, %v160
      %v162 = vpop.f32.mrf.mxu0
      %163 = vdwg.mxu0
      %v164 = vunpack.c.l.bf16 %v118
      %v165 = vunpack.c.l.bf16 %v119
      %v166 = vunpack.c.l.bf16 %v120
      %v167 = vmul.f32 %v164, %v164
      %v168 = vmul.f32 %v165, %v165
      %v169 = vmul.f32 %v166, %v166
      %173 = vrot.lane.b32.xlu0 %v167, 96
      %v174 = vpop.permute.xlu0 %173
      %175 = vrot.lane.b32.xlu0 %v168, 96
      %v176 = vpop.permute.xlu0 %175
      %177 = vrot.lane.b32.xlu0 %v169, 96
      %v178 = vpop.permute.xlu0 %177
      %v182 = vsel %vm133, %v174, 0.0
      %183 = vadd.xlane.f32.xlu0 %v182
      %v184 = vpop.xlane.xlu0 %183
      %v185 = vsel %vm133, %v176, 0.0
      %186 = vadd.xlane.f32.xlu0 %v185
      %v187 = vpop.xlane.xlu0 %186
      %vm188 = vcmask 57344
      %v189 = vsel %vm188, %v178, 0.0
      %190 = vadd.xlane.f32.xlu0 %v189
      %v191 = vpop.xlane.xlu0 %190
      %v192 = vmul.f32 %v156, 2.0
      %v193 = vmul.f32 %v158, 2.0
      %v194 = vmul.f32 %v161, 2.0
      %195 = vxpose.xlu0.b32.start [1/16] %v184, 128
      %196 = vxpose.xlu0.b32.cont [2/16] %v187, 128
      %197 = vxpose.xlu0.b32.cont [3/16] %v191, 128
      %198 = vxpose.xlu0.b32.cont [4/16] 0.0, 128
      %199 = vxpose.xlu0.b32.cont [5/16] 0.0, 128
      %200 = vxpose.xlu0.b32.cont [6/16] 0.0, 128
      %201 = vxpose.xlu0.b32.cont [7/16] 0.0, 128
      %202 = vxpose.xlu0.b32.cont [8/16] 0.0, 128
      %203 = vxpose.xlu0.b32.cont [9/16] 0.0, 128
      %204 = vxpose.xlu0.b32.cont [10/16] 0.0, 128
      %205 = vxpose.xlu0.b32.cont [11/16] 0.0, 128
      %206 = vxpose.xlu0.b32.cont [12/16] 0.0, 128
      %207 = vxpose.xlu0.b32.cont [13/16] 0.0, 128
      %208 = vxpose.xlu0.b32.cont [14/16] 0.0, 128
      %209 = vxpose.xlu0.b32.cont [15/16] 0.0, 128
      %210 = vxpose.xlu0.b32.end [16/16] 0.0, 128
      %v211 = vpop.trf.xlu0
      %v212 = vpop.trf.xlu0
      %v213 = vpop.trf.xlu0
      %v214 = vpop.trf.xlu0
      %v215 = vpop.trf.xlu0
      %v216 = vpop.trf.xlu0
      %v217 = vpop.trf.xlu0
      %v218 = vpop.trf.xlu0
      %v219 = vpop.trf.xlu0
      %v220 = vpop.trf.xlu0
      %v221 = vpop.trf.xlu0
      %v222 = vpop.trf.xlu0
      %v223 = vpop.trf.xlu0
      %v224 = vpop.trf.xlu0
      %v225 = vpop.trf.xlu0
      %v226 = vpop.trf.xlu0
      %v227 = vperm.slane %v211, 0
      %v228 = vsub.f32 %v192, %v227
      %v229 = vsub.f32 %v193, %v227
      %v230 = vsub.f32 %v194, %v227
      %v231 = vmul.f32 %v228, 0.35355338
      %v232 = vmul.f32 %v229, 0.35355338
      %v233 = vmul.f32 %v230, 0.35355338
      %vm234 = vcmask 138240
      %v235 = vsel %vm234, %v231, -inf
      %236 = vmax.xlane.f32.xlu0 %v235
      %v237 = vpop.xlane.xlu0 %236
      %v238 = vsel %vm234, %v232, -inf
      %239 = vmax.xlane.f32.xlu0 %v238
      %v240 = vpop.xlane.xlu0 %239
      %vm241 = vcmask 131072
      %v242 = vsel %vm241, %v233, -inf
      %243 = vmax.xlane.f32.xlu0 %v242
      %v244 = vpop.xlane.xlu0 %243
      %v245 = vsub.f32 %v231, %v237
      %v246 = vsub.f32 %v232, %v240
      %v247 = vsub.f32 %v233, %v244
      %v248 = vmul.f32 %v245, 1.442695
      %v249 = vpow.pop %v248
      %v250 = vmul.f32 %v246, 1.442695
      %v251 = vpow.pop %v250
      %v252 = vmul.f32 %v247, 1.442695
      %v253 = vpow.pop %v252
      %v254 = vsel %vm234, %v249, 0.0
      %255 = vadd.xlane.f32.xlu0 %v254
      %v256 = vpop.xlane.xlu0 %255
      %v257 = vsel %vm234, %v251, 0.0
      %258 = vadd.xlane.f32.xlu0 %v257
      %v259 = vpop.xlane.xlu0 %258
      %v260 = vsel %vm241, %v253, 0.0
      %261 = vadd.xlane.f32.xlu0 %v260
      %v262 = vpop.xlane.xlu0 %261
      %v263 = vrcp.pop %v256
      %v264 = vrcp.pop %v259
      %v265 = vrcp.pop %v262
      %v266 = vmul.f32 %v249, %v263
      %v267 = vmul.f32 %v251, %v264
      %v268 = vmul.f32 %v253, %v265
      %v269 = vpack.c.bf16 %v267, %v266
      %v270 = vpack.c.bf16 %v268, %v268
      %271 = vrot.lane.b32.xlu0 %v127, 64
      %v272 = vpop.permute.xlu0 %271
      %273 = vrot.lane.b32.xlu0 %v128, 64
      %v274 = vpop.permute.xlu0 %273
      %v277 = vsel %vm234, %v269, 0
      %v280 = vsel %vm234, %v270, 0
      %vm282 = vcmask 1040384
      %v283 = vsel 0, 4294967295, 65535
      %v284 = vsel %vm282, %v283, 0
      %v286 = vand.u32 %v274, %v284
      %288 = vmatpush.bf16.msra.mxu0 0
      %289 = vmatpush.bf16.msra.mxu0 0
      %290 = vmatpush.bf16.msra.mxu0 0
      %291 = vmatpush.bf16.msra.mxu0 0
      %292 = vmatpush.bf16.msra.mxu0 0
      %293 = vmatpush.bf16.msra.mxu0 0
      %294 = vmatpush.bf16.msra.mxu0 %v286
      %295 = vmatpush.bf16.msra.mxu0 %v272
      %296 = vmatmul.bf16.gmra.mxu0 %v277
      %v297 = vpop.f32.mrf.mxu0
      %v298 = vadd.f32 0.0, %v297
      %v299 = vpop.f32.mrf.mxu0
      %v300 = vadd.f32 0.0, %v299
      %301 = vmatmul.bf16.gmra.mxu0 %v280
      %v302 = vpop.f32.mrf.mxu0
      %v303 = vadd.f32 0.0, %v302
      %v304 = vpop.f32.mrf.mxu0
      %305 = vdwg.mxu0
      %v306 = vpack.c.bf16 %v298, %v298
      %v307 = vpack.c.bf16 %v300, %v300
      %v308 = vpack.c.bf16 %v303, %v303
      %vm309 = vcmask 60416
      %310 = vst.msk [vmem:[%s116] sm:$0xf] %vm309, %v306
      %311 = vst.msk [vmem:[%s116 + $0x4] sm:$0xf] %vm309, %v307
      %vm312 = vcmask 57344
      %vm313 = vsmask.f32 256
      %vm314 = vmand %vm312, %vm313
      %v315 = vld [vmem:[%s116 + $0x8] sm:$0x1]
      %v316 = vsel %vm314, %v308, %v315
      %317 = vst [vmem:[%s116 + $0x8] sm:$0x1] %v316
      %v318 = vld [vmem:[%s111] sm:$0xf]
      %v319 = vld [vmem:[%s111 + $0x4] sm:$0xf]
      %v320 = vld [vmem:[%s111 + $0x8] sm:$0x1]
      %v324 = vunpack.c.l.b16 %v318
      %v325 = vunpack.c.l.b16 %v319
      %v326 = vunpack.c.l.b16 %v320
      %v327 = vpack.c.b16 %v325, %v324
      %v328 = vpack.c.b16 %v326, %v326
      %329 = vrot.lane.b32.xlu0 %v327, 120
      %v330 = vpop.permute.xlu0 %329
      %331 = vrot.lane.b32.xlu0 %v328, 120
      %v332 = vpop.permute.xlu0 %331
      %333 = vrot.lane.b32.xlu0 %v327, 88
      %v334 = vpop.permute.xlu0 %333
      %335 = vrot.lane.b32.xlu0 %v328, 88
      %v336 = vpop.permute.xlu0 %335
      %v338 = vsel %vm133, %v330, 0
      %v341 = vsel %vm133, %v332, 0
      %v344 = vsel %vm133, %v334, 0
      %v347 = vsel %vm133, %v336, 0
      %349 = vmatpush.bf16.xpose.msra.mxu0 0
      %350 = vmatpush.bf16.xpose.msra.mxu0 0
      %351 = vmatpush.bf16.xpose.msra.mxu0 0
      %352 = vmatpush.bf16.xpose.msra.mxu0 0
      %353 = vmatpush.bf16.xpose.msra.mxu0 0
      %354 = vmatpush.bf16.xpose.msra.mxu0 0
      %355 = vmatpush.bf16.xpose.msra.mxu0 %v347
      %356 = vmatpush.bf16.xpose.msra.mxu0 %v344
      %357 = vmatmul.bf16.gmra.mxu0 %v338
      %v358 = vpop.f32.mrf.mxu0
      %v359 = vadd.f32 0.0, %v358
      %v360 = vpop.f32.mrf.mxu0
      %v361 = vadd.f32 0.0, %v360
      %362 = vmatmul.bf16.gmra.mxu0 %v341
      %v363 = vpop.f32.mrf.mxu0
      %v364 = vadd.f32 0.0, %v363
      %v365 = vpop.f32.mrf.mxu0
      %366 = vdwg.mxu0
      %v367 = vunpack.c.l.bf16 %v318
      %v368 = vunpack.c.l.bf16 %v319
      %v369 = vunpack.c.l.bf16 %v320
      %v370 = vmul.f32 %v367, %v367
      %v371 = vmul.f32 %v368, %v368
      %v372 = vmul.f32 %v369, %v369
      %376 = vrot.lane.b32.xlu0 %v370, 88
      %v377 = vpop.permute.xlu0 %376
      %378 = vrot.lane.b32.xlu0 %v371, 88
      %v379 = vpop.permute.xlu0 %378
      %380 = vrot.lane.b32.xlu0 %v372, 88
      %v381 = vpop.permute.xlu0 %380
      %v385 = vsel %vm133, %v377, 0.0
      %386 = vadd.xlane.f32.xlu0 %v385
      %v387 = vpop.xlane.xlu0 %386
      %v388 = vsel %vm133, %v379, 0.0
      %389 = vadd.xlane.f32.xlu0 %v388
      %v390 = vpop.xlane.xlu0 %389
      %v391 = vsel %vm188, %v381, 0.0
      %392 = vadd.xlane.f32.xlu0 %v391
      %v393 = vpop.xlane.xlu0 %392
      %v394 = vmul.f32 %v359, 2.0
      %v395 = vmul.f32 %v361, 2.0
      %v396 = vmul.f32 %v364, 2.0
      %397 = vxpose.xlu0.b32.start [1/16] %v387, 128
      %398 = vxpose.xlu0.b32.cont [2/16] %v390, 128
      %399 = vxpose.xlu0.b32.cont [3/16] %v393, 128
      %400 = vxpose.xlu0.b32.cont [4/16] 0.0, 128
      %401 = vxpose.xlu0.b32.cont [5/16] 0.0, 128
      %402 = vxpose.xlu0.b32.cont [6/16] 0.0, 128
      %403 = vxpose.xlu0.b32.cont [7/16] 0.0, 128
      %404 = vxpose.xlu0.b32.cont [8/16] 0.0, 128
      %405 = vxpose.xlu0.b32.cont [9/16] 0.0, 128
      %406 = vxpose.xlu0.b32.cont [10/16] 0.0, 128
      %407 = vxpose.xlu0.b32.cont [11/16] 0.0, 128
      %408 = vxpose.xlu0.b32.cont [12/16] 0.0, 128
      %409 = vxpose.xlu0.b32.cont [13/16] 0.0, 128
      %410 = vxpose.xlu0.b32.cont [14/16] 0.0, 128
      %411 = vxpose.xlu0.b32.cont [15/16] 0.0, 128
      %412 = vxpose.xlu0.b32.end [16/16] 0.0, 128
      %v413 = vpop.trf.xlu0
      %v414 = vpop.trf.xlu0
      %v415 = vpop.trf.xlu0
      %v416 = vpop.trf.xlu0
      %v417 = vpop.trf.xlu0
      %v418 = vpop.trf.xlu0
      %v419 = vpop.trf.xlu0
      %v420 = vpop.trf.xlu0
      %v421 = vpop.trf.xlu0
      %v422 = vpop.trf.xlu0
      %v423 = vpop.trf.xlu0
      %v424 = vpop.trf.xlu0
      %v425 = vpop.trf.xlu0
      %v426 = vpop.trf.xlu0
      %v427 = vpop.trf.xlu0
      %v428 = vpop.trf.xlu0
      %v429 = vperm.slane %v413, 0
      %v430 = vsub.f32 %v394, %v429
      %v431 = vsub.f32 %v395, %v429
      %v432 = vsub.f32 %v396, %v429
      %v433 = vmul.f32 %v430, 0.35355338
      %v434 = vmul.f32 %v431, 0.35355338
      %v435 = vmul.f32 %v432, 0.35355338
      %v436 = vsel %vm234, %v433, -inf
      %437 = vmax.xlane.f32.xlu0 %v436
      %v438 = vpop.xlane.xlu0 %437
      %v439 = vsel %vm234, %v434, -inf
      %440 = vmax.xlane.f32.xlu0 %v439
      %v441 = vpop.xlane.xlu0 %440
      %v442 = vsel %vm241, %v435, -inf
      %443 = vmax.xlane.f32.xlu0 %v442
      %v444 = vpop.xlane.xlu0 %443
      %v445 = vsub.f32 %v433, %v438
      %v446 = vsub.f32 %v434, %v441
      %v447 = vsub.f32 %v435, %v444
      %v448 = vmul.f32 %v445, 1.442695
      %v449 = vpow.pop %v448
      %v450 = vmul.f32 %v446, 1.442695
      %v451 = vpow.pop %v450
      %v452 = vmul.f32 %v447, 1.442695
      %v453 = vpow.pop %v452
      %v454 = vsel %vm234, %v449, 0.0
      %455 = vadd.xlane.f32.xlu0 %v454
      %v456 = vpop.xlane.xlu0 %455
      %v457 = vsel %vm234, %v451, 0.0
      %458 = vadd.xlane.f32.xlu0 %v457
      %v459 = vpop.xlane.xlu0 %458
      %v460 = vsel %vm241, %v453, 0.0
      %461 = vadd.xlane.f32.xlu0 %v460
      %v462 = vpop.xlane.xlu0 %461
      %v463 = vrcp.pop %v456
      %v464 = vrcp.pop %v459
      %v465 = vrcp.pop %v462
      %v466 = vmul.f32 %v449, %v463
      %v467 = vmul.f32 %v451, %v464
      %v468 = vmul.f32 %v453, %v465
      %v469 = vpack.c.bf16 %v467, %v466
      %v470 = vpack.c.bf16 %v468, %v468
      %471 = vrot.lane.b32.xlu0 %v327, 56
      %v472 = vpop.permute.xlu0 %471
      %473 = vrot.lane.b32.xlu0 %v328, 56
      %v474 = vpop.permute.xlu0 %473
      %v477 = vsel %vm234, %v469, 0
      %v480 = vsel %vm234, %v470, 0
      %v483 = vand.u32 %v474, %v284
      %485 = vmatpush.bf16.msra.mxu0 0
      %486 = vmatpush.bf16.msra.mxu0 0
      %487 = vmatpush.bf16.msra.mxu0 0
      %488 = vmatpush.bf16.msra.mxu0 0
      %489 = vmatpush.bf16.msra.mxu0 0
      %490 = vmatpush.bf16.msra.mxu0 0
      %491 = vmatpush.bf16.msra.mxu0 %v483
      %492 = vmatpush.bf16.msra.mxu0 %v472
      %493 = vmatmul.bf16.gmra.mxu0 %v477
      %v494 = vpop.f32.mrf.mxu0
      %v495 = vadd.f32 0.0, %v494
      %v496 = vpop.f32.mrf.mxu0
      %v497 = vadd.f32 0.0, %v496
      %498 = vmatmul.bf16.gmra.mxu0 %v480
      %v499 = vpop.f32.mrf.mxu0
      %v500 = vadd.f32 0.0, %v499
      %v501 = vpop.f32.mrf.mxu0
      %502 = vdwg.mxu0
      %v503 = vpack.c.bf16 %v495, %v495
      %v504 = vpack.c.bf16 %v497, %v497
      %v505 = vpack.c.bf16 %v500, %v500
      %509 = vrot.lane.b32.xlu0 %v503, 8
      %v510 = vpop.permute.xlu0 %509
      %511 = vrot.lane.b32.xlu0 %v504, 8
      %v512 = vpop.permute.xlu0 %511
      %513 = vrot.lane.b32.xlu0 %v505, 8
      %v514 = vpop.permute.xlu0 %513
      %vm518 = vcmask 126016
      %519 = vst.msk [vmem:[%s116] sm:$0xf] %vm518, %v510
      %520 = vst.msk [vmem:[%s116 + $0x4] sm:$0xf] %vm518, %v512
      %vm521 = vcmask 122944
      %vm522 = vmand %vm521, %vm313
      %v523 = vld [vmem:[%s116 + $0x8] sm:$0x1]
      %v524 = vsel %vm522, %v514, %v523
      %525 = vst [vmem:[%s116 + $0x8] sm:$0x1] %v524
      %v526 = vld [vmem:[%s111] sm:$0xf]
      %v527 = vld [vmem:[%s111 + $0x4] sm:$0xf]
      %v528 = vld [vmem:[%s111 + $0x8] sm:$0x1]
      %v532 = vunpack.c.l.b16 %v526
      %v533 = vunpack.c.l.b16 %v527
      %v534 = vunpack.c.l.b16 %v528
      %v535 = vpack.c.b16 %v533, %v532
      %v536 = vpack.c.b16 %v534, %v534
      %537 = vrot.lane.b32.xlu0 %v535, 112
      %v538 = vpop.permute.xlu0 %537
      %539 = vrot.lane.b32.xlu0 %v536, 112
      %v540 = vpop.permute.xlu0 %539
      %541 = vrot.lane.b32.xlu0 %v535, 80
      %v542 = vpop.permute.xlu0 %541
      %543 = vrot.lane.b32.xlu0 %v536, 80
      %v544 = vpop.permute.xlu0 %543
      %v546 = vsel %vm133, %v538, 0
      %v549 = vsel %vm133, %v540, 0
      %v552 = vsel %vm133, %v542, 0
      %v555 = vsel %vm133, %v544, 0
      %557 = vmatpush.bf16.xpose.msra.mxu0 0
      %558 = vmatpush.bf16.xpose.msra.mxu0 0
      %559 = vmatpush.bf16.xpose.msra.mxu0 0
      %560 = vmatpush.bf16.xpose.msra.mxu0 0
      %561 = vmatpush.bf16.xpose.msra.mxu0 0
      %562 = vmatpush.bf16.xpose.msra.mxu0 0
      %563 = vmatpush.bf16.xpose.msra.mxu0 %v555
      %564 = vmatpush.bf16.xpose.msra.mxu0 %v552
      %565 = vmatmul.bf16.gmra.mxu0 %v546
      %v566 = vpop.f32.mrf.mxu0
      %v567 = vadd.f32 0.0, %v566
      %v568 = vpop.f32.mrf.mxu0
      %v569 = vadd.f32 0.0, %v568
      %570 = vmatmul.bf16.gmra.mxu0 %v549
      %v571 = vpop.f32.mrf.mxu0
      %v572 = vadd.f32 0.0, %v571
      %v573 = vpop.f32.mrf.mxu0
      %574 = vdwg.mxu0
      %v575 = vunpack.c.l.bf16 %v526
      %v576 = vunpack.c.l.bf16 %v527
      %v577 = vunpack.c.l.bf16 %v528
      %v578 = vmul.f32 %v575, %v575
      %v579 = vmul.f32 %v576, %v576
      %v580 = vmul.f32 %v577, %v577
      %584 = vrot.lane.b32.xlu0 %v578, 80
      %v585 = vpop.permute.xlu0 %584
      %586 = vrot.lane.b32.xlu0 %v579, 80
      %v587 = vpop.permute.xlu0 %586
      %588 = vrot.lane.b32.xlu0 %v580, 80
      %v589 = vpop.permute.xlu0 %588
      %v593 = vsel %vm133, %v585, 0.0
      %594 = vadd.xlane.f32.xlu0 %v593
      %v595 = vpop.xlane.xlu0 %594
      %v596 = vsel %vm133, %v587, 0.0
      %597 = vadd.xlane.f32.xlu0 %v596
      %v598 = vpop.xlane.xlu0 %597
      %v599 = vsel %vm188, %v589, 0.0
      %600 = vadd.xlane.f32.xlu0 %v599
      %v601 = vpop.xlane.xlu0 %600
      %v602 = vmul.f32 %v567, 2.0
      %v603 = vmul.f32 %v569, 2.0
      %v604 = vmul.f32 %v572, 2.0
      %605 = vxpose.xlu0.b32.start [1/16] %v595, 128
      %606 = vxpose.xlu0.b32.cont [2/16] %v598, 128
      %607 = vxpose.xlu0.b32.cont [3/16] %v601, 128
      %608 = vxpose.xlu0.b32.cont [4/16] 0.0, 128
      %609 = vxpose.xlu0.b32.cont [5/16] 0.0, 128
      %610 = vxpose.xlu0.b32.cont [6/16] 0.0, 128
      %611 = vxpose.xlu0.b32.cont [7/16] 0.0, 128
      %612 = vxpose.xlu0.b32.cont [8/16] 0.0, 128
      %613 = vxpose.xlu0.b32.cont [9/16] 0.0, 128
      %614 = vxpose.xlu0.b32.cont [10/16] 0.0, 128
      %615 = vxpose.xlu0.b32.cont [11/16] 0.0, 128
      %616 = vxpose.xlu0.b32.cont [12/16] 0.0, 128
      %617 = vxpose.xlu0.b32.cont [13/16] 0.0, 128
      %618 = vxpose.xlu0.b32.cont [14/16] 0.0, 128
      %619 = vxpose.xlu0.b32.cont [15/16] 0.0, 128
      %620 = vxpose.xlu0.b32.end [16/16] 0.0, 128
      %v621 = vpop.trf.xlu0
      %v622 = vpop.trf.xlu0
      %v623 = vpop.trf.xlu0
      %v624 = vpop.trf.xlu0
      %v625 = vpop.trf.xlu0
      %v626 = vpop.trf.xlu0
      %v627 = vpop.trf.xlu0
      %v628 = vpop.trf.xlu0
      %v629 = vpop.trf.xlu0
      %v630 = vpop.trf.xlu0
      %v631 = vpop.trf.xlu0
      %v632 = vpop.trf.xlu0
      %v633 = vpop.trf.xlu0
      %v634 = vpop.trf.xlu0
      %v635 = vpop.trf.xlu0
      %v636 = vpop.trf.xlu0
      %v637 = vperm.slane %v621, 0
      %v638 = vsub.f32 %v602, %v637
      %v639 = vsub.f32 %v603, %v637
      %v640 = vsub.f32 %v604, %v637
      %v641 = vmul.f32 %v638, 0.35355338
      %v642 = vmul.f32 %v639, 0.35355338
      %v643 = vmul.f32 %v640, 0.35355338
      %v644 = vsel %vm234, %v641, -inf
      %645 = vmax.xlane.f32.xlu0 %v644
      %v646 = vpop.xlane.xlu0 %645
      %v647 = vsel %vm234, %v642, -inf
      %648 = vmax.xlane.f32.xlu0 %v647
      %v649 = vpop.xlane.xlu0 %648
      %v650 = vsel %vm241, %v643, -inf
      %651 = vmax.xlane.f32.xlu0 %v650
      %v652 = vpop.xlane.xlu0 %651
      %v653 = vsub.f32 %v641, %v646
      %v654 = vsub.f32 %v642, %v649
      %v655 = vsub.f32 %v643, %v652
      %v656 = vmul.f32 %v653, 1.442695
      %v657 = vpow.pop %v656
      %v658 = vmul.f32 %v654, 1.442695
      %v659 = vpow.pop %v658
      %v660 = vmul.f32 %v655, 1.442695
      %v661 = vpow.pop %v660
      %v662 = vsel %vm234, %v657, 0.0
      %663 = vadd.xlane.f32.xlu0 %v662
      %v664 = vpop.xlane.xlu0 %663
      %v665 = vsel %vm234, %v659, 0.0
      %666 = vadd.xlane.f32.xlu0 %v665
      %v667 = vpop.xlane.xlu0 %666
      %v668 = vsel %vm241, %v661, 0.0
      %669 = vadd.xlane.f32.xlu0 %v668
      %v670 = vpop.xlane.xlu0 %669
      %v671 = vrcp.pop %v664
      %v672 = vrcp.pop %v667
      %v673 = vrcp.pop %v670
      %v674 = vmul.f32 %v657, %v671
      %v675 = vmul.f32 %v659, %v672
      %v676 = vmul.f32 %v661, %v673
      %v677 = vpack.c.bf16 %v675, %v674
      %v678 = vpack.c.bf16 %v676, %v676
      %679 = vrot.lane.b32.xlu0 %v535, 48
      %v680 = vpop.permute.xlu0 %679
      %681 = vrot.lane.b32.xlu0 %v536, 48
      %v682 = vpop.permute.xlu0 %681
      %v685 = vsel %vm234, %v677, 0
      %v688 = vsel %vm234, %v678, 0
      %v691 = vand.u32 %v682, %v284
      %693 = vmatpush.bf16.msra.mxu0 0
      %694 = vmatpush.bf16.msra.mxu0 0
      %695 = vmatpush.bf16.msra.mxu0 0
      %696 = vmatpush.bf16.msra.mxu0 0
      %697 = vmatpush.bf16.msra.mxu0 0
      %698 = vmatpush.bf16.msra.mxu0 0
      %699 = vmatpush.bf16.msra.mxu0 %v691
      %700 = vmatpush.bf16.msra.mxu0 %v680
      %701 = vmatmul.bf16.gmra.mxu0 %v685
      %v702 = vpop.f32.mrf.mxu0
      %v703 = vadd.f32 0.0, %v702
      %v704 = vpop.f32.mrf.mxu0
      %v705 = vadd.f32 0.0, %v704
      %706 = vmatmul.bf16.gmra.mxu0 %v688
      %v707 = vpop.f32.mrf.mxu0
      %v708 = vadd.f32 0.0, %v707
      %v709 = vpop.f32.mrf.mxu0
      %710 = vdwg.mxu0
      %v711 = vpack.c.bf16 %v703, %v703
      %v712 = vpack.c.bf16 %v705, %v705
      %v713 = vpack.c.bf16 %v708, %v708
      %717 = vrot.lane.b32.xlu0 %v711, 16
      %v718 = vpop.permute.xlu0 %717
      %719 = vrot.lane.b32.xlu0 %v712, 16
      %v720 = vpop.permute.xlu0 %719
      %721 = vrot.lane.b32.xlu0 %v713, 16
      %v722 = vpop.permute.xlu0 %721
      %vm726 = vcmask 191616
      %727 = vst.msk [vmem:[%s116] sm:$0xf] %vm726, %v718
      %728 = vst.msk [vmem:[%s116 + $0x4] sm:$0xf] %vm726, %v720
      %vm729 = vcmask 188544
      %vm730 = vmand %vm729, %vm313
      %v731 = vld [vmem:[%s116 + $0x8] sm:$0x1]
      %v732 = vsel %vm730, %v722, %v731
      %733 = vst [vmem:[%s116 + $0x8] sm:$0x1] %v732
      %v734 = vld [vmem:[%s111] sm:$0xf]
      %v735 = vld [vmem:[%s111 + $0x4] sm:$0xf]
      %v736 = vld [vmem:[%s111 + $0x8] sm:$0x1]
      %v740 = vunpack.c.l.b16 %v734
      %v741 = vunpack.c.l.b16 %v735
      %v742 = vunpack.c.l.b16 %v736
      %v743 = vpack.c.b16 %v741, %v740
      %v744 = vpack.c.b16 %v742, %v742
      %745 = vrot.lane.b32.xlu0 %v743, 104
      %v746 = vpop.permute.xlu0 %745
      %747 = vrot.lane.b32.xlu0 %v744, 104
      %v748 = vpop.permute.xlu0 %747
      %749 = vrot.lane.b32.xlu0 %v743, 72
      %v750 = vpop.permute.xlu0 %749
      %751 = vrot.lane.b32.xlu0 %v744, 72
      %v752 = vpop.permute.xlu0 %751
      %v754 = vsel %vm133, %v746, 0
      %v757 = vsel %vm133, %v748, 0
      %v760 = vsel %vm133, %v750, 0
      %v763 = vsel %vm133, %v752, 0
      %765 = vmatpush.bf16.xpose.msra.mxu0 0
      %766 = vmatpush.bf16.xpose.msra.mxu0 0
      %767 = vmatpush.bf16.xpose.msra.mxu0 0
      %768 = vmatpush.bf16.xpose.msra.mxu0 0
      %769 = vmatpush.bf16.xpose.msra.mxu0 0
      %770 = vmatpush.bf16.xpose.msra.mxu0 0
      %771 = vmatpush.bf16.xpose.msra.mxu0 %v763
      %772 = vmatpush.bf16.xpose.msra.mxu0 %v760
      %773 = vmatmul.bf16.gmra.mxu0 %v754
      %v774 = vpop.f32.mrf.mxu0
      %v775 = vadd.f32 0.0, %v774
      %v776 = vpop.f32.mrf.mxu0
      %v777 = vadd.f32 0.0, %v776
      %778 = vmatmul.bf16.gmra.mxu0 %v757
      %v779 = vpop.f32.mrf.mxu0
      %v780 = vadd.f32 0.0, %v779
      %v781 = vpop.f32.mrf.mxu0
      %782 = vdwg.mxu0
      %v783 = vunpack.c.l.bf16 %v734
      %v784 = vunpack.c.l.bf16 %v735
      %v785 = vunpack.c.l.bf16 %v736
      %v786 = vmul.f32 %v783, %v783
      %v787 = vmul.f32 %v784, %v784
      %v788 = vmul.f32 %v785, %v785
      %792 = vrot.lane.b32.xlu0 %v786, 72
      %v793 = vpop.permute.xlu0 %792
      %794 = vrot.lane.b32.xlu0 %v787, 72
      %v795 = vpop.permute.xlu0 %794
      %796 = vrot.lane.b32.xlu0 %v788, 72
      %v797 = vpop.permute.xlu0 %796
      %v801 = vsel %vm133, %v793, 0.0
      %802 = vadd.xlane.f32.xlu0 %v801
      %v803 = vpop.xlane.xlu0 %802
      %v804 = vsel %vm133, %v795, 0.0
      %805 = vadd.xlane.f32.xlu0 %v804
      %v806 = vpop.xlane.xlu0 %805
      %v807 = vsel %vm188, %v797, 0.0
      %808 = vadd.xlane.f32.xlu0 %v807
      %v809 = vpop.xlane.xlu0 %808
      %v810 = vmul.f32 %v775, 2.0
      %v811 = vmul.f32 %v777, 2.0
      %v812 = vmul.f32 %v780, 2.0
      %813 = vxpose.xlu0.b32.start [1/16] %v803, 128
      %814 = vxpose.xlu0.b32.cont [2/16] %v806, 128
      %815 = vxpose.xlu0.b32.cont [3/16] %v809, 128
      %816 = vxpose.xlu0.b32.cont [4/16] 0.0, 128
      %817 = vxpose.xlu0.b32.cont [5/16] 0.0, 128
      %818 = vxpose.xlu0.b32.cont [6/16] 0.0, 128
      %819 = vxpose.xlu0.b32.cont [7/16] 0.0, 128
      %820 = vxpose.xlu0.b32.cont [8/16] 0.0, 128
      %821 = vxpose.xlu0.b32.cont [9/16] 0.0, 128
      %822 = vxpose.xlu0.b32.cont [10/16] 0.0, 128
      %823 = vxpose.xlu0.b32.cont [11/16] 0.0, 128
      %824 = vxpose.xlu0.b32.cont [12/16] 0.0, 128
      %825 = vxpose.xlu0.b32.cont [13/16] 0.0, 128
      %826 = vxpose.xlu0.b32.cont [14/16] 0.0, 128
      %827 = vxpose.xlu0.b32.cont [15/16] 0.0, 128
      %828 = vxpose.xlu0.b32.end [16/16] 0.0, 128
      %v829 = vpop.trf.xlu0
      %v830 = vpop.trf.xlu0
      %v831 = vpop.trf.xlu0
      %v832 = vpop.trf.xlu0
      %v833 = vpop.trf.xlu0
      %v834 = vpop.trf.xlu0
      %v835 = vpop.trf.xlu0
      %v836 = vpop.trf.xlu0
      %v837 = vpop.trf.xlu0
      %v838 = vpop.trf.xlu0
      %v839 = vpop.trf.xlu0
      %v840 = vpop.trf.xlu0
      %v841 = vpop.trf.xlu0
      %v842 = vpop.trf.xlu0
      %v843 = vpop.trf.xlu0
      %v844 = vpop.trf.xlu0
      %v845 = vperm.slane %v829, 0
      %v846 = vsub.f32 %v810, %v845
      %v847 = vsub.f32 %v811, %v845
      %v848 = vsub.f32 %v812, %v845
      %v849 = vmul.f32 %v846, 0.35355338
      %v850 = vmul.f32 %v847, 0.35355338
      %v851 = vmul.f32 %v848, 0.35355338
      %v852 = vsel %vm234, %v849, -inf
      %853 = vmax.xlane.f32.xlu0 %v852
      %v854 = vpop.xlane.xlu0 %853
      %v855 = vsel %vm234, %v850, -inf
      %856 = vmax.xlane.f32.xlu0 %v855
      %v857 = vpop.xlane.xlu0 %856
      %v858 = vsel %vm241, %v851, -inf
      %859 = vmax.xlane.f32.xlu0 %v858
      %v860 = vpop.xlane.xlu0 %859
      %v861 = vsub.f32 %v849, %v854
      %v862 = vsub.f32 %v850, %v857
      %v863 = vsub.f32 %v851, %v860
      %v864 = vmul.f32 %v861, 1.442695
      %v865 = vpow.pop %v864
      %v866 = vmul.f32 %v862, 1.442695
      %v867 = vpow.pop %v866
      %v868 = vmul.f32 %v863, 1.442695
      %v869 = vpow.pop %v868
      %v870 = vsel %vm234, %v865, 0.0
      %871 = vadd.xlane.f32.xlu0 %v870
      %v872 = vpop.xlane.xlu0 %871
      %v873 = vsel %vm234, %v867, 0.0
      %874 = vadd.xlane.f32.xlu0 %v873
      %v875 = vpop.xlane.xlu0 %874
      %v876 = vsel %vm241, %v869, 0.0
      %877 = vadd.xlane.f32.xlu0 %v876
      %v878 = vpop.xlane.xlu0 %877
      %v879 = vrcp.pop %v872
      %v880 = vrcp.pop %v875
      %v881 = vrcp.pop %v878
      %v882 = vmul.f32 %v865, %v879
      %v883 = vmul.f32 %v867, %v880
      %v884 = vmul.f32 %v869, %v881
      %v885 = vpack.c.bf16 %v883, %v882
      %v886 = vpack.c.bf16 %v884, %v884
      %887 = vrot.lane.b32.xlu0 %v743, 40
      %v888 = vpop.permute.xlu0 %887
      %889 = vrot.lane.b32.xlu0 %v744, 40
      %v890 = vpop.permute.xlu0 %889
      %v893 = vsel %vm234, %v885, 0
      %v896 = vsel %vm234, %v886, 0
      %v899 = vand.u32 %v890, %v284
      %901 = vmatpush.bf16.msra.mxu0 0
      %902 = vmatpush.bf16.msra.mxu0 0
      %903 = vmatpush.bf16.msra.mxu0 0
      %904 = vmatpush.bf16.msra.mxu0 0
      %905 = vmatpush.bf16.msra.mxu0 0
      %906 = vmatpush.bf16.msra.mxu0 0
      %907 = vmatpush.bf16.msra.mxu0 %v899
      %908 = vmatpush.bf16.msra.mxu0 %v888
      %909 = vmatmul.bf16.gmra.mxu0 %v893
      %v910 = vpop.f32.mrf.mxu0
      %v911 = vadd.f32 0.0, %v910
      %v912 = vpop.f32.mrf.mxu0
      %v913 = vadd.f32 0.0, %v912
      %914 = vmatmul.bf16.gmra.mxu0 %v896
      %v915 = vpop.f32.mrf.mxu0
      %v916 = vadd.f32 0.0, %v915
      %v917 = vpop.f32.mrf.mxu0
      %918 = vdwg.mxu0
      %v919 = vpack.c.bf16 %v911, %v911
      %v920 = vpack.c.bf16 %v913, %v913
      %v921 = vpack.c.bf16 %v916, %v916
      %925 = vrot.lane.b32.xlu0 %v919, 24
      %v926 = vpop.permute.xlu0 %925
      %927 = vrot.lane.b32.xlu0 %v920, 24
      %v928 = vpop.permute.xlu0 %927
      %929 = vrot.lane.b32.xlu0 %v921, 24
      %v930 = vpop.permute.xlu0 %929
      %vm934 = vcmask 257216
      %935 = vst.msk [vmem:[%s116] sm:$0xf] %vm934, %v926
      %936 = vst.msk [vmem:[%s116 + $0x4] sm:$0xf] %vm934, %v928
      %vm937 = vcmask 254144
      %vm938 = vmand %vm937, %vm313
      %v939 = vld [vmem:[%s116 + $0x8] sm:$0x1]
      %v940 = vsel %vm938, %v930, %v939
      %941 = vst [vmem:[%s116 + $0x8] sm:$0x1] %v940
      %p942 = scmp.lt.s32.totalorder %s12, 1
      %s943 = scalar_select %p942, %s12, 1
      %s944 = smul.addr %s943, 3
      %s945 = smul.addr %s944, 4
      %s946 = scalar_lea.vmem %s1, %s945
      // Predicated region
      $region25: #{vit_forward.13} parent=23 // pred_check
        %p947 = pneg %p56
      $region26: #{vit_forward.13} parent=23 // pred_check_branch
        %949 = sbr.rel (%p947) target = $region28
      $region27: #{vit_forward.13} parent=23 // pred_region
        _
      $region28: #{vit_forward.13} parent=23 // pred_fallthru
        _
    $region24: #{vit_forward.13} parent=5 // pred_fallthru
      _
    %p950 = scmp.le.s32.totalorder 2, %s7
    // Predicated region
    $region29: #{vit_forward.13} parent=5 // pred_check
      %p951 = pneg %p950
    $region30: #{vit_forward.13} parent=5 // pred_check_branch
      %953 = sbr.rel (%p951) target = $region32
    $region31: #{vit_forward.13} parent=5 // pred_region
      %s954 = ssub.s32 %s7, 2
      // Predicated region
      $region33: #{vit_forward.13} parent=31 // pred_check
        %p955 = pneg %p62
      $region34: #{vit_forward.13} parent=31 // pred_check_branch
        %957 = sbr.rel (%p955) target = $region36
      $region35: #{vit_forward.13} parent=31 // pred_region
        %p958 = scmp.lt.s32.totalorder %s13, 1
        %s959 = scalar_select %p958, %s13, 1
        %s960 = smul.addr %s959, 3
        %s961 = smul.addr %s960, 4
        %s962 = scalar_lea.vmem %s1, %s961
      $region36: #{vit_forward.13} parent=31 // pred_fallthru
        _
    $region32: #{vit_forward.13} parent=5 // pred_fallthru
      _
  $region6: #{vit_forward.13} parent=0 // loop_footer
    %s11 = sadd.s32 1, %s7
  $region7: #{vit_forward.13} parent=0 // loop_footer_branch
    %6 = sbr.rel target = $region3
  $region8: #{vit_forward.13} parent=0 // loop_exit
    _

// kernel: vit_forward.14
$region0: #{vit_forward.14}
  #allocation0 [shape = 'u32[]', space=smem, size = 0x4, offset = 0x4, fixed_abs, tag = 'smem constant byte address 0x4 - core index']
  #allocation1 [shape = 'u32[72,128]{1,0:T(1,128)}', space=vmem, size = 0x9000, scoped, tag = 'internal scratch']
  #allocation2 [shape = 'f32[40,32]{1,0:T(8,128)}', space=vmem, size = 0x5000, scoped, tag = 'scratch operand']
  %s0 = inlined_call_operand.vmem [shape: bf16[40,32], index: 0, kind: input, shape index: {}]
  %s1 = inlined_call_operand.vmem [shape: bf16[32,32], index: 1, kind: input, shape index: {}]
  %s2 = inlined_call_operand.vmem [shape: f32[1,32], index: 2, kind: input, shape index: {}]
  %s3 = inlined_call_operand.vmem [shape: f32[40,32], index: 3, kind: input, shape index: {}]
  %s4 = inlined_call_operand.vmem [shape: f32[40,32], index: 4, kind: output, shape index: {}]
  %s5 = sld [smem:[#allocation0]]
  $region34: #{vit_forward.14} parent=0
    _
  %s7 = ssub.s32 1, %s5
  %s8 = scalar_select 0, %s7, %s5
  // Predicated region
  $region2: #{vit_forward.14} parent=0 // pred_check
    _
  $region3: #{vit_forward.14} parent=0 // pred_check_branch
    %10 = sbr.rel (0) target = $region5
  $region4: #{vit_forward.14} parent=0 // pred_region
    _
  $region5: #{vit_forward.14} parent=0 // pred_fallthru
    _
  // Predicated region
  $region6: #{vit_forward.14} parent=0 // pred_check
    _
  $region7: #{vit_forward.14} parent=0 // pred_check_branch
    %12 = sbr.rel (0) target = $region9
  $region8: #{vit_forward.14} parent=0 // pred_region
    _
  $region9: #{vit_forward.14} parent=0 // pred_fallthru
    _
  // Predicated region
  $region10: #{vit_forward.14} parent=0 // pred_check
    _
  $region11: #{vit_forward.14} parent=0 // pred_check_branch
    %14 = sbr.rel (0) target = $region13
  $region12: #{vit_forward.14} parent=0 // pred_region
    _
  $region13: #{vit_forward.14} parent=0 // pred_fallthru
    _
  // Predicated region
  $region14: #{vit_forward.14} parent=0 // pred_check
    _
  $region15: #{vit_forward.14} parent=0 // pred_check_branch
    %16 = sbr.rel (0) target = $region17
  $region16: #{vit_forward.14} parent=0 // pred_region
    _
  $region17: #{vit_forward.14} parent=0 // pred_fallthru
    _
  %p18 = scmp.eq.s32.totalorder 0, 0
  // Predicated region
  $region18: #{vit_forward.14} parent=0 // pred_check
    %p19 = pneg %p18
  $region19: #{vit_forward.14} parent=0 // pred_check_branch
    %21 = sbr.rel (%p19) target = $region21
  $region20: #{vit_forward.14} parent=0 // pred_region
    %vm22 = vcmask 261120
    %23 = vst.msk [vmem:[#allocation2] sm:$0xff] %vm22, 0.0
    %24 = vst.msk [vmem:[#allocation2 + $0x8] sm:$0xff] %vm22, 0.0
    %25 = vst.msk [vmem:[#allocation2 + $0x10] sm:$0xff] %vm22, 0.0
    %26 = vst.msk [vmem:[#allocation2 + $0x18] sm:$0xff] %vm22, 0.0
    %27 = vst.msk [vmem:[#allocation2 + $0x20] sm:$0xff] %vm22, 0.0
  $region21: #{vit_forward.14} parent=0 // pred_fallthru
    _
  %v28 = vld [vmem:[#allocation2] sm:$0xff]
  %v29 = vld [vmem:[#allocation2 + $0x8] sm:$0xff]
  %v30 = vld [vmem:[#allocation2 + $0x10] sm:$0xff]
  %v31 = vld [vmem:[#allocation2 + $0x18] sm:$0xff]
  %v32 = vld [vmem:[#allocation2 + $0x20] sm:$0xff]
  %v33 = vld [vmem:[%s0] sm:$0xf]
  %v34 = vld [vmem:[%s0 + $0x4] sm:$0xf]
  %v35 = vld [vmem:[%s0 + $0x8] sm:$0xf]
  %v36 = vld [vmem:[%s0 + $0xc] sm:$0xf]
  %v37 = vld [vmem:[%s0 + $0x10] sm:$0xf]
  %v38 = vld [vmem:[%s1] sm:$0xf]
  %v39 = vld [vmem:[%s1 + $0x4] sm:$0xf]
  %v40 = vld [vmem:[%s1 + $0x8] sm:$0xf]
  %v41 = vld [vmem:[%s1 + $0xc] sm:$0xf]
  %v47 = vunpack.c.l.b16 %v33
  %v48 = vunpack.c.l.b16 %v34
  %v49 = vunpack.c.l.b16 %v35
  %v50 = vunpack.c.l.b16 %v36
  %v51 = vunpack.c.l.b16 %v37
  %v52 = vpack.c.b16 %v48, %v47
  %v53 = vpack.c.b16 %v50, %v49
  %v54 = vpack.c.b16 %v51, %v51
  %v59 = vunpack.c.l.b16 %v38
  %v60 = vunpack.c.l.b16 %v39
  %v61 = vunpack.c.l.b16 %v40
  %v62 = vunpack.c.l.b16 %v41
  %v63 = vpack.c.b16 %v60, %v59
  %v64 = vpack.c.b16 %v62, %v61
  %vm67 = vcmask 261120
  %v69 = vsel %vm67, %v52, 0
  %v72 = vsel %vm67, %v53, 0
  %v75 = vsel %vm67, %v54, 0
  %77 = vmatpush.bf16.msra.mxu0 0
  %78 = vmatpush.bf16.msra.mxu0 0
  %79 = vmatpush.bf16.msra.mxu0 0
  %80 = vmatpush.bf16.msra.mxu0 0
  %81 = vmatpush.bf16.msra.mxu0 0
  %82 = vmatpush.bf16.msra.mxu0 0
  %83 = vmatpush.bf16.msra.mxu0 %v64
  %84 = vmatpush.bf16.msra.mxu0 %v63
  %85 = vmatmul.bf16.gmra.mxu0 %v69
  %v86 = vpop.f32.mrf.mxu0
  %v87 = vadd.f32 0.0, %v86
  %v88 = vpop.f32.mrf.mxu0
  %v89 = vadd.f32 0.0, %v88
  %90 = vmatmul.bf16.gmra.mxu0 %v72
  %v91 = vpop.f32.mrf.mxu0
  %v92 = vadd.f32 0.0, %v91
  %v93 = vpop.f32.mrf.mxu0
  %v94 = vadd.f32 0.0, %v93
  %95 = vmatmul.bf16.gmra.mxu0 %v75
  %v96 = vpop.f32.mrf.mxu0
  %v97 = vadd.f32 0.0, %v96
  %v98 = vpop.f32.mrf.mxu0
  %99 = vdwg.mxu0
  %v100 = vadd.f32 %v28, %v87
  %v101 = vadd.f32 %v29, %v89
  %v102 = vadd.f32 %v30, %v92
  %v103 = vadd.f32 %v31, %v94
  %v104 = vadd.f32 %v32, %v97
  %105 = vst.msk [vmem:[#allocation2] sm:$0xff] %vm67, %v100
  %106 = vst.msk [vmem:[#allocation2 + $0x8] sm:$0xff] %vm67, %v101
  %107 = vst.msk [vmem:[#allocation2 + $0x10] sm:$0xff] %vm67, %v102
  %108 = vst.msk [vmem:[#allocation2 + $0x18] sm:$0xff] %vm67, %v103
  %109 = vst.msk [vmem:[#allocation2 + $0x20] sm:$0xff] %vm67, %v104
  // Predicated region
  $region22: #{vit_forward.14} parent=0 // pred_check
    %p110 = pneg %p18
  $region23: #{vit_forward.14} parent=0 // pred_check_branch
    %112 = sbr.rel (%p110) target = $region25
  $region24: #{vit_forward.14} parent=0 // pred_region
    %v113 = vld [vmem:[#allocation2] sm:$0xff]
    %v114 = vld [vmem:[#allocation2 + $0x8] sm:$0xff]
    %v115 = vld [vmem:[#allocation2 + $0x10] sm:$0xff]
    %v116 = vld [vmem:[#allocation2 + $0x18] sm:$0xff]
    %v117 = vld [vmem:[#allocation2 + $0x20] sm:$0xff]
    %v118 = vld [vmem:[%s2] sm:$0x1]
    %v120 = vperm.slane %v118, 0
    %v122 = vadd.f32 %v113, %v120
    %v123 = vadd.f32 %v114, %v120
    %v124 = vadd.f32 %v115, %v120
    %v125 = vadd.f32 %v116, %v120
    %v126 = vadd.f32 %v117, %v120
    %v127 = vld [vmem:[%s3] sm:$0xff]
    %v128 = vld [vmem:[%s3 + $0x8] sm:$0xff]
    %v129 = vld [vmem:[%s3 + $0x10] sm:$0xff]
    %v130 = vld [vmem:[%s3 + $0x18] sm:$0xff]
    %v131 = vld [vmem:[%s3 + $0x20] sm:$0xff]
    %v132 = vadd.f32 %v122, %v127
    %v133 = vadd.f32 %v123, %v128
    %v134 = vadd.f32 %v124, %v129
    %v135 = vadd.f32 %v125, %v130
    %v136 = vadd.f32 %v126, %v131
    %137 = vst.msk [vmem:[%s4] sm:$0xff] %vm67, %v132
    %138 = vst.msk [vmem:[%s4 + $0x8] sm:$0xff] %vm67, %v133
    %139 = vst.msk [vmem:[%s4 + $0x10] sm:$0xff] %vm67, %v134
    %140 = vst.msk [vmem:[%s4 + $0x18] sm:$0xff] %vm67, %v135
    %141 = vst.msk [vmem:[%s4 + $0x20] sm:$0xff] %vm67, %v136
  $region25: #{vit_forward.14} parent=0 // pred_fallthru
    _
  // Predicated region
  $region26: #{vit_forward.14} parent=0 // pred_check
    _
  $region27: #{vit_forward.14} parent=0 // pred_check_branch
    %143 = sbr.rel (0) target = $region29
  $region28: #{vit_forward.14} parent=0 // pred_region
    _
  $region29: #{vit_forward.14} parent=0 // pred_fallthru
    _
  // Predicated region
  $region30: #{vit_forward.14} parent=0 // pred_check
    _
  $region31: #{vit_forward.14} parent=0 // pred_check_branch
    %145 = sbr.rel (0) target = $region33
  $region32: #{vit_forward.14} parent=0 // pred_region
    _
  $region33: #{vit_forward.14} parent=0 // pred_fallthru
    _

// kernel: vit_forward.15
$region0: #{vit_forward.15}
  #allocation0 [shape = 'u32[]', space=smem, size = 0x4, offset = 0x4, fixed_abs, tag = 'smem constant byte address 0x4 - core index']
  #allocation1 [shape = 'u32[72,128]{1,0:T(1,128)}', space=vmem, size = 0x9000, scoped, tag = 'internal scratch']
  #allocation2 [shape = 'bf16[40,32]{1,0:T(8,128)(2,1)}', space=vmem, size = 0x2800, scoped, tag = 'scratch operand']
  %s0 = inlined_call_operand.vmem [shape: f32[40,32], index: 0, kind: input, shape index: {}]
  %s1 = inlined_call_operand.vmem [shape: f32[1,32], index: 1, kind: input, shape index: {}]
  %s2 = inlined_call_operand.vmem [shape: f32[1,32], index: 2, kind: input, shape index: {}]
  %s3 = inlined_call_operand.vmem [shape: bf16[32,128], index: 3, kind: input, shape index: {}]
  %s4 = inlined_call_operand.vmem [shape: f32[1,128], index: 4, kind: input, shape index: {}]
  %s5 = inlined_call_operand.vmem [shape: bf16[40,128], index: 5, kind: output, shape index: {}]
  %s6 = sld [smem:[#allocation0]]
  $region34: #{vit_forward.15} parent=0
    _
  %s8 = ssub.s32 1, %s6
  %s9 = scalar_select 0, %s8, %s6
  // Predicated region
  $region2: #{vit_forward.15} parent=0 // pred_check
    _
  $region3: #{vit_forward.15} parent=0 // pred_check_branch
    %11 = sbr.rel (0) target = $region5
  $region4: #{vit_forward.15} parent=0 // pred_region
    _
  $region5: #{vit_forward.15} parent=0 // pred_fallthru
    _
  // Predicated region
  $region6: #{vit_forward.15} parent=0 // pred_check
    _
  $region7: #{vit_forward.15} parent=0 // pred_check_branch
    %13 = sbr.rel (0) target = $region9
  $region8: #{vit_forward.15} parent=0 // pred_region
    _
  $region9: #{vit_forward.15} parent=0 // pred_fallthru
    _
  // Predicated region
  $region10: #{vit_forward.15} parent=0 // pred_check
    _
  $region11: #{vit_forward.15} parent=0 // pred_check_branch
    %15 = sbr.rel (0) target = $region13
  $region12: #{vit_forward.15} parent=0 // pred_region
    _
  $region13: #{vit_forward.15} parent=0 // pred_fallthru
    _
  // Predicated region
  $region14: #{vit_forward.15} parent=0 // pred_check
    _
  $region15: #{vit_forward.15} parent=0 // pred_check_branch
    %17 = sbr.rel (0) target = $region17
  $region16: #{vit_forward.15} parent=0 // pred_region
    _
  $region17: #{vit_forward.15} parent=0 // pred_fallthru
    _
  // Predicated region
  $region18: #{vit_forward.15} parent=0 // pred_check
    _
  $region19: #{vit_forward.15} parent=0 // pred_check_branch
    %19 = sbr.rel (0) target = $region21
  $region20: #{vit_forward.15} parent=0 // pred_region
    _
  $region21: #{vit_forward.15} parent=0 // pred_fallthru
    _
  %p21 = scmp.eq.s32.totalorder 0, 0
  // Predicated region
  $region22: #{vit_forward.15} parent=0 // pred_check
    %p22 = pneg %p21
  $region23: #{vit_forward.15} parent=0 // pred_check_branch
    %24 = sbr.rel (%p22) target = $region25
  $region24: #{vit_forward.15} parent=0 // pred_region
    %v25 = vld [vmem:[%s0] sm:$0xff]
    %v26 = vld [vmem:[%s0 + $0x8] sm:$0xff]
    %v27 = vld [vmem:[%s0 + $0x10] sm:$0xff]
    %v28 = vld [vmem:[%s0 + $0x18] sm:$0xff]
    %v29 = vld [vmem:[%s0 + $0x20] sm:$0xff]
    %vm30 = vcmask 261120
    %v31 = vsel %vm30, %v25, 0.0
    %32 = vadd.xlane.f32.xlu0 %v31
    %v33 = vpop.xlane.xlu0 %32
    %v34 = vsel %vm30, %v26, 0.0
    %35 = vadd.xlane.f32.xlu0 %v34
    %v36 = vpop.xlane.xlu0 %35
    %v37 = vsel %vm30, %v27, 0.0
    %38 = vadd.xlane.f32.xlu0 %v37
    %v39 = vpop.xlane.xlu0 %38
    %v40 = vsel %vm30, %v28, 0.0
    %41 = vadd.xlane.f32.xlu0 %v40
    %v42 = vpop.xlane.xlu0 %41
    %v43 = vsel %vm30, %v29, 0.0
    %44 = vadd.xlane.f32.xlu0 %v43
    %v45 = vpop.xlane.xlu0 %44
    %v46 = vrcp.pop 32.0
    %v47 = vmul.f32 32.0, %v46
    %v48 = vsub.f32 1.0, %v47
    %v49 = vmul.f32 %v46, %v48
    %v50 = vadd.f32 %v46, %v49
    %vm51 = vweird.f32 %v46
    %v52 = vsel %vm51, %v46, %v50
    %v53 = vmul.f32 %v33, %v52
    %v54 = vmul.f32 %v36, %v52
    %v55 = vmul.f32 %v39, %v52
    %v56 = vmul.f32 %v42, %v52
    %v57 = vmul.f32 %v45, %v52
    %v58 = vsub.f32 %v25, %v53
    %v59 = vsub.f32 %v26, %v54
    %v60 = vsub.f32 %v27, %v55
    %v61 = vsub.f32 %v28, %v56
    %v62 = vsub.f32 %v29, %v57
    %v63 = vmul.f32 %v58, %v58
    %v64 = vmul.f32 %v59, %v59
    %v65 = vmul.f32 %v60, %v60
    %v66 = vmul.f32 %v61, %v61
    %v67 = vmul.f32 %v62, %v62
    %v68 = vsel %vm30, %v63, 0.0
    %69 = vadd.xlane.f32.xlu0 %v68
    %v70 = vpop.xlane.xlu0 %69
    %v71 = vsel %vm30, %v64, 0.0
    %72 = vadd.xlane.f32.xlu0 %v71
    %v73 = vpop.xlane.xlu0 %72
    %v74 = vsel %vm30, %v65, 0.0
    %75 = vadd.xlane.f32.xlu0 %v74
    %v76 = vpop.xlane.xlu0 %75
    %v77 = vsel %vm30, %v66, 0.0
    %78 = vadd.xlane.f32.xlu0 %v77
    %v79 = vpop.xlane.xlu0 %78
    %v80 = vsel %vm30, %v67, 0.0
    %81 = vadd.xlane.f32.xlu0 %v80
    %v82 = vpop.xlane.xlu0 %81
    %v83 = vmul.f32 %v70, %v52
    %v84 = vmul.f32 %v73, %v52
    %v85 = vmul.f32 %v76, %v52
    %v86 = vmul.f32 %v79, %v52
    %v87 = vmul.f32 %v82, %v52
    %v88 = vadd.f32 %v83, 1e-06
    %v89 = vadd.f32 %v84, 1e-06
    %v90 = vadd.f32 %v85, 1e-06
    %v91 = vadd.f32 %v86, 1e-06
    %v92 = vadd.f32 %v87, 1e-06
    %v93 = vrsqrt.pop %v88
    %v94 = vmul.f32 %v93, %v88
    %v95 = vmul.f32 %v94, %v93
    %v96 = vmul.f32 0.5, %v95
    %v97 = vsub.f32 1.5, %v96
    %v98 = vmul.f32 %v93, %v97
    %vm99 = vweird.f32 %v88
    %vm100 = vweird.f32 %v93
    %vm101 = vmor %vm99, %vm100
    %v102 = vsel %vm101, %v93, %v98
    %v103 = vrsqrt.pop %v89
    %v104 = vmul.f32 %v103, %v89
    %v105 = vmul.f32 %v104, %v103
    %v106 = vmul.f32 0.5, %v105
    %v107 = vsub.f32 1.5, %v106
    %v108 = vmul.f32 %v103, %v107
    %vm109 = vweird.f32 %v89
    %vm110 = vweird.f32 %v103
    %vm111 = vmor %vm109, %vm110
    %v112 = vsel %vm111, %v103, %v108
    %v113 = vrsqrt.pop %v90
    %v114 = vmul.f32 %v113, %v90
    %v115 = vmul.f32 %v114, %v113
    %v116 = vmul.f32 0.5, %v115
    %v117 = vsub.f32 1.5, %v116
    %v118 = vmul.f32 %v113, %v117
    %vm119 = vweird.f32 %v90
    %vm120 = vweird.f32 %v113
    %vm121 = vmor %vm119, %vm120
    %v122 = vsel %vm121, %v113, %v118
    %v123 = vrsqrt.pop %v91
    %v124 = vmul.f32 %v123, %v91
    %v125 = vmul.f32 %v124, %v123
    %v126 = vmul.f32 0.5, %v125
    %v127 = vsub.f32 1.5, %v126
    %v128 = vmul.f32 %v123, %v127
    %vm129 = vweird.f32 %v91
    %vm130 = vweird.f32 %v123
    %vm131 = vmor %vm129, %vm130
    %v132 = vsel %vm131, %v123, %v128
    %v133 = vrsqrt.pop %v92
    %v134 = vmul.f32 %v133, %v92
    %v135 = vmul.f32 %v134, %v133
    %v136 = vmul.f32 0.5, %v135
    %v137 = vsub.f32 1.5, %v136
    %v138 = vmul.f32 %v133, %v137
    %vm139 = vweird.f32 %v92
    %vm140 = vweird.f32 %v133
    %vm141 = vmor %vm139, %vm140
    %v142 = vsel %vm141, %v133, %v138
    %v143 = vmul.f32 %v58, %v102
    %v144 = vmul.f32 %v59, %v112
    %v145 = vmul.f32 %v60, %v122
    %v146 = vmul.f32 %v61, %v132
    %v147 = vmul.f32 %v62, %v142
    %v148 = vld [vmem:[%s1] sm:$0x1]
    %v150 = vperm.slane %v148, 0
    %v152 = vmul.f32 %v143, %v150
    %v153 = vmul.f32 %v144, %v150
    %v154 = vmul.f32 %v145, %v150
    %v155 = vmul.f32 %v146, %v150
    %v156 = vmul.f32 %v147, %v150
    %v157 = vld [vmem:[%s2] sm:$0x1]
    %v159 = vperm.slane %v157, 0
    %v161 = vadd.f32 %v152, %v159
    %v162 = vadd.f32 %v153, %v159
    %v163 = vadd.f32 %v154, %v159
    %v164 = vadd.f32 %v155, %v159
    %v165 = vadd.f32 %v156, %v159
    %v166 = vpack.c.bf16 %v161, %v161
    %v167 = vpack.c.bf16 %v162, %v162
    %v168 = vpack.c.bf16 %v163, %v163
    %v169 = vpack.c.bf16 %v164, %v164
    %v170 = vpack.c.bf16 %v165, %v165
    %vm171 = vcmask 257024
    %172 = vst.msk [vmem:[#allocation2] sm:$0xf] %vm171, %v166
    %173 = vst.msk [vmem:[#allocation2 + $0x4] sm:$0xf] %vm171, %v167
    %174 = vst.msk [vmem:[#allocation2 + $0x8] sm:$0xf] %vm171, %v168
    %175 = vst.msk [vmem:[#allocation2 + $0xc] sm:$0xf] %vm171, %v169
    %176 = vst.msk [vmem:[#allocation2 + $0x10] sm:$0xf] %vm171, %v170
  $region25: #{vit_forward.15} parent=0 // pred_fallthru
    _
  %v177 = vld [vmem:[#allocation2] sm:$0xf]
  %v178 = vld [vmem:[#allocation2 + $0x4] sm:$0xf]
  %v179 = vld [vmem:[#allocation2 + $0x8] sm:$0xf]
  %v180 = vld [vmem:[#allocation2 + $0xc] sm:$0xf]
  %v181 = vld [vmem:[#allocation2 + $0x10] sm:$0xf]
  %v182 = vld [vmem:[%s3] sm:$0xf]
  %v183 = vld [vmem:[%s3 + $0x4] sm:$0xf]
  %v184 = vld [vmem:[%s3 + $0x8] sm:$0xf]
  %v185 = vld [vmem:[%s3 + $0xc] sm:$0xf]
  %v186 = vld [vmem:[%s4] sm:$0x1]
  %v188 = vperm.slane %v186, 0
  %v195 = vunpack.c.l.b16 %v177
  %v196 = vunpack.c.l.b16 %v178
  %v197 = vunpack.c.l.b16 %v179
  %v198 = vunpack.c.l.b16 %v180
  %v199 = vunpack.c.l.b16 %v181
  %v200 = vpack.c.b16 %v196, %v195
  %v201 = vpack.c.b16 %v198, %v197
  %v202 = vpack.c.b16 %v199, %v199
  %v207 = vunpack.c.l.b16 %v182
  %v208 = vunpack.c.l.b16 %v183
  %v209 = vunpack.c.l.b16 %v184
  %v210 = vunpack.c.l.b16 %v185
  %v211 = vpack.c.b16 %v208, %v207
  %v212 = vpack.c.b16 %v210, %v209
  %vm215 = vcmask 261120
  %v217 = vsel %vm215, %v200, 0
  %v220 = vsel %vm215, %v201, 0
  %v223 = vsel %vm215, %v202, 0
  %225 = vmatpush.bf16.msra.mxu0 0
  %226 = vmatpush.bf16.msra.mxu0 0
  %227 = vmatpush.bf16.msra.mxu0 0
  %228 = vmatpush.bf16.msra.mxu0 0
  %229 = vmatpush.bf16.msra.mxu0 0
  %230 = vmatpush.bf16.msra.mxu0 0
  %231 = vmatpush.bf16.msra.mxu0 %v212
  %232 = vmatpush.bf16.msra.mxu0 %v211
  %233 = vmatmul.bf16.gmra.mxu0 %v217
  %v234 = vpop.f32.mrf.mxu0
  %v235 = vadd.f32 %v188, %v234
  %v236 = vpop.f32.mrf.mxu0
  %v237 = vadd.f32 %v188, %v236
  %238 = vmatmul.bf16.gmra.mxu0 %v220
  %v239 = vpop.f32.mrf.mxu0
  %v240 = vadd.f32 %v188, %v239
  %v241 = vpop.f32.mrf.mxu0
  %v242 = vadd.f32 %v188, %v241
  %243 = vmatmul.bf16.gmra.mxu0 %v223
  %v244 = vpop.f32.mrf.mxu0
  %v245 = vadd.f32 %v188, %v244
  %v246 = vpop.f32.mrf.mxu0
  %247 = vdwg.mxu0
  %v248 = vmul.f32 %v235, 0.5
  %v249 = vmul.f32 %v237, 0.5
  %v250 = vmul.f32 %v240, 0.5
  %v251 = vmul.f32 %v242, 0.5
  %v252 = vmul.f32 %v245, 0.5
  %v253 = vmul.f32 %v235, 0.044715
  %v254 = vmul.f32 %v237, 0.044715
  %v255 = vmul.f32 %v240, 0.044715
  %v256 = vmul.f32 %v242, 0.044715
  %v257 = vmul.f32 %v245, 0.044715
  %v258 = vmul.f32 %v253, %v235
  %v259 = vmul.f32 %v254, %v237
  %v260 = vmul.f32 %v255, %v240
  %v261 = vmul.f32 %v256, %v242
  %v262 = vmul.f32 %v257, %v245
  %v263 = vmul.f32 %v258, %v235
  %v264 = vmul.f32 %v259, %v237
  %v265 = vmul.f32 %v260, %v240
  %v266 = vmul.f32 %v261, %v242
  %v267 = vmul.f32 %v262, %v245
  %v268 = vadd.f32 %v235, %v263
  %v269 = vadd.f32 %v237, %v264
  %v270 = vadd.f32 %v240, %v265
  %v271 = vadd.f32 %v242, %v266
  %v272 = vadd.f32 %v245, %v267
  %v273 = vmul.f32 %v268, 0.7978846
  %v274 = vmul.f32 %v269, 0.7978846
  %v275 = vmul.f32 %v270, 0.7978846
  %v276 = vmul.f32 %v271, 0.7978846
  %v277 = vmul.f32 %v272, 0.7978846
  %v278 = vtanh.pop %v273
  %v279 = vtanh.pop %v274
  %v280 = vtanh.pop %v275
  %v281 = vtanh.pop %v276
  %v282 = vtanh.pop %v277
  %v283 = vadd.f32 %v278, 1.0
  %v284 = vadd.f32 %v279, 1.0
  %v285 = vadd.f32 %v280, 1.0
  %v286 = vadd.f32 %v281, 1.0
  %v287 = vadd.f32 %v282, 1.0
  %v288 = vmul.f32 %v248, %v283
  %v289 = vmul.f32 %v249, %v284
  %v290 = vmul.f32 %v250, %v285
  %v291 = vmul.f32 %v251, %v286
  %v292 = vmul.f32 %v252, %v287
  %v293 = vpack.c.bf16 %v288, %v288
  %v294 = vpack.c.bf16 %v289, %v289
  %v295 = vpack.c.bf16 %v290, %v290
  %v296 = vpack.c.bf16 %v291, %v291
  %v297 = vpack.c.bf16 %v292, %v292
  %298 = vst [vmem:[%s5] sm:$0xf] %v293
  %299 = vst [vmem:[%s5 + $0x4] sm:$0xf] %v294
  %300 = vst [vmem:[%s5 + $0x8] sm:$0xf] %v295
  %301 = vst [vmem:[%s5 + $0xc] sm:$0xf] %v296
  %302 = vst [vmem:[%s5 + $0x10] sm:$0xf] %v297
  // Predicated region
  $region26: #{vit_forward.15} parent=0 // pred_check
    _
  $region27: #{vit_forward.15} parent=0 // pred_check_branch
    %304 = sbr.rel (0) target = $region29
  $region28: #{vit_forward.15} parent=0 // pred_region
    _
  $region29: #{vit_forward.15} parent=0 // pred_fallthru
    _
  // Predicated region
  $region30: #{vit_forward.15} parent=0 // pred_check
    _
  $region31: #{vit_forward.15} parent=0 // pred_check_branch
    %306 = sbr.rel (0) target = $region33
  $region32: #{vit_forward.15} parent=0 // pred_region
    _
  $region33: #{vit_forward.15} parent=0 // pred_fallthru
    _

// kernel: vit_forward.16
$region0: #{vit_forward.16}
  #allocation0 [shape = 'u32[]', space=smem, size = 0x4, offset = 0x4, fixed_abs, tag = 'smem constant byte address 0x4 - core index']
  #allocation1 [shape = 'u32[72,128]{1,0:T(1,128)}', space=vmem, size = 0x9000, scoped, tag = 'internal scratch']
  #allocation2 [shape = 'f32[40,32]{1,0:T(8,128)}', space=vmem, size = 0x5000, scoped, tag = 'scratch operand']
  %s0 = inlined_call_operand.vmem [shape: bf16[40,128], index: 0, kind: input, shape index: {}]
  %s1 = inlined_call_operand.vmem [shape: bf16[128,32], index: 1, kind: input, shape index: {}]
  %s2 = inlined_call_operand.vmem [shape: f32[1,32], index: 2, kind: input, shape index: {}]
  %s3 = inlined_call_operand.vmem [shape: f32[40,32], index: 3, kind: input, shape index: {}]
  %s4 = inlined_call_operand.vmem [shape: f32[40,32], index: 4, kind: output, shape index: {}]
  %s5 = sld [smem:[#allocation0]]
  $region34: #{vit_forward.16} parent=0
    _
  %s7 = ssub.s32 1, %s5
  %s8 = scalar_select 0, %s7, %s5
  // Predicated region
  $region2: #{vit_forward.16} parent=0 // pred_check
    _
  $region3: #{vit_forward.16} parent=0 // pred_check_branch
    %10 = sbr.rel (0) target = $region5
  $region4: #{vit_forward.16} parent=0 // pred_region
    _
  $region5: #{vit_forward.16} parent=0 // pred_fallthru
    _
  // Predicated region
  $region6: #{vit_forward.16} parent=0 // pred_check
    _
  $region7: #{vit_forward.16} parent=0 // pred_check_branch
    %12 = sbr.rel (0) target = $region9
  $region8: #{vit_forward.16} parent=0 // pred_region
    _
  $region9: #{vit_forward.16} parent=0 // pred_fallthru
    _
  // Predicated region
  $region10: #{vit_forward.16} parent=0 // pred_check
    _
  $region11: #{vit_forward.16} parent=0 // pred_check_branch
    %14 = sbr.rel (0) target = $region13
  $region12: #{vit_forward.16} parent=0 // pred_region
    _
  $region13: #{vit_forward.16} parent=0 // pred_fallthru
    _
  // Predicated region
  $region14: #{vit_forward.16} parent=0 // pred_check
    _
  $region15: #{vit_forward.16} parent=0 // pred_check_branch
    %16 = sbr.rel (0) target = $region17
  $region16: #{vit_forward.16} parent=0 // pred_region
    _
  $region17: #{vit_forward.16} parent=0 // pred_fallthru
    _
  %p17 = scmp.eq.s32.totalorder 0, 0
  // Predicated region
  $region18: #{vit_forward.16} parent=0 // pred_check
    %p18 = pneg %p17
  $region19: #{vit_forward.16} parent=0 // pred_check_branch
    %20 = sbr.rel (%p18) target = $region21
  $region20: #{vit_forward.16} parent=0 // pred_region
    %vm21 = vcmask 261120
    %22 = vst.msk [vmem:[#allocation2] sm:$0xff] %vm21, 0.0
    %23 = vst.msk [vmem:[#allocation2 + $0x8] sm:$0xff] %vm21, 0.0
    %24 = vst.msk [vmem:[#allocation2 + $0x10] sm:$0xff] %vm21, 0.0
    %25 = vst.msk [vmem:[#allocation2 + $0x18] sm:$0xff] %vm21, 0.0
    %26 = vst.msk [vmem:[#allocation2 + $0x20] sm:$0xff] %vm21, 0.0
  $region21: #{vit_forward.16} parent=0 // pred_fallthru
    _
  %v27 = vld [vmem:[#allocation2] sm:$0xff]
  %v28 = vld [vmem:[#allocation2 + $0x8] sm:$0xff]
  %v29 = vld [vmem:[#allocation2 + $0x10] sm:$0xff]
  %v30 = vld [vmem:[#allocation2 + $0x18] sm:$0xff]
  %v31 = vld [vmem:[#allocation2 + $0x20] sm:$0xff]
  %v32 = vld [vmem:[%s0] sm:$0xf]
  %v33 = vld [vmem:[%s0 + $0x4] sm:$0xf]
  %v34 = vld [vmem:[%s0 + $0x8] sm:$0xf]
  %v35 = vld [vmem:[%s0 + $0xc] sm:$0xf]
  %v36 = vld [vmem:[%s0 + $0x10] sm:$0xf]
  %v37 = vld [vmem:[%s1] sm:$0xf]
  %v38 = vld [vmem:[%s1 + $0x4] sm:$0xf]
  %v39 = vld [vmem:[%s1 + $0x8] sm:$0xf]
  %v40 = vld [vmem:[%s1 + $0xc] sm:$0xf]
  %v41 = vld [vmem:[%s1 + $0x10] sm:$0xf]
  %v42 = vld [vmem:[%s1 + $0x14] sm:$0xf]
  %v43 = vld [vmem:[%s1 + $0x18] sm:$0xf]
  %v44 = vld [vmem:[%s1 + $0x1c] sm:$0xf]
  %v45 = vld [vmem:[%s1 + $0x20] sm:$0xf]
  %v46 = vld [vmem:[%s1 + $0x24] sm:$0xf]
  %v47 = vld [vmem:[%s1 + $0x28] sm:$0xf]
  %v48 = vld [vmem:[%s1 + $0x2c] sm:$0xf]
  %v49 = vld [vmem:[%s1 + $0x30] sm:$0xf]
  %v50 = vld [vmem:[%s1 + $0x34] sm:$0xf]
  %v51 = vld [vmem:[%s1 + $0x38] sm:$0xf]
  %v52 = vld [vmem:[%s1 + $0x3c] sm:$0xf]
  %v58 = vunpack.c.l.b16 %v32
  %v59 = vunpack.c.l.b16 %v33
  %v60 = vunpack.c.l.b16 %v34
  %v61 = vunpack.c.l.b16 %v35
  %v62 = vunpack.c.l.b16 %v36
  %v63 = vpack.c.b16 %v59, %v58
  %v64 = vpack.c.b16 %v61, %v60
  %v65 = vpack.c.b16 %v62, %v62
  %v85 = vunpack.c.l.b16 %v37
  %v86 = vunpack.c.l.b16 %v38
  %v87 = vunpack.c.l.b16 %v39
  %v88 = vunpack.c.l.b16 %v40
  %v89 = vunpack.c.l.b16 %v41
  %v90 = vunpack.c.l.b16 %v42
  %v91 = vunpack.c.l.b16 %v43
  %v92 = vunpack.c.l.b16 %v44
  %v93 = vunpack.c.l.b16 %v45
  %v94 = vunpack.c.l.b16 %v46
  %v95 = vunpack.c.l.b16 %v47
  %v96 = vunpack.c.l.b16 %v48
  %v97 = vunpack.c.l.b16 %v49
  %v98 = vunpack.c.l.b16 %v50
  %v99 = vunpack.c.l.b16 %v51
  %v100 = vunpack.c.l.b16 %v52
  %v101 = vpack.c.b16 %v86, %v85
  %v102 = vpack.c.b16 %v88, %v87
  %v103 = vpack.c.b16 %v90, %v89
  %v104 = vpack.c.b16 %v92, %v91
  %v105 = vpack.c.b16 %v94, %v93
  %v106 = vpack.c.b16 %v96, %v95
  %v107 = vpack.c.b16 %v98, %v97
  %v108 = vpack.c.b16 %v100, %v99
  %117 = vmatpush.bf16.msra.mxu0 %v108
  %118 = vmatpush.bf16.msra.mxu0 %v107
  %119 = vmatpush.bf16.msra.mxu0 %v106
  %120 = vmatpush.bf16.msra.mxu0 %v105
  %121 = vmatpush.bf16.msra.mxu0 %v104
  %122 = vmatpush.bf16.msra.mxu0 %v103
  %123 = vmatpush.bf16.msra.mxu0 %v102
  %124 = vmatpush.bf16.msra.mxu0 %v101
  %125 = vmatmul.bf16.gmra.mxu0 %v63
  %v126 = vpop.f32.mrf.mxu0
  %v127 = vadd.f32 0.0, %v126
  %v128 = vpop.f32.mrf.mxu0
  %v129 = vadd.f32 0.0, %v128
  %130 = vmatmul.bf16.gmra.mxu0 %v64
  %v131 = vpop.f32.mrf.mxu0
  %v132 = vadd.f32 0.0, %v131
  %v133 = vpop.f32.mrf.mxu0
  %v134 = vadd.f32 0.0, %v133
  %135 = vmatmul.bf16.gmra.mxu0 %v65
  %v136 = vpop.f32.mrf.mxu0
  %v137 = vadd.f32 0.0, %v136
  %v138 = vpop.f32.mrf.mxu0
  %139 = vdwg.mxu0
  %v140 = vadd.f32 %v27, %v127
  %v141 = vadd.f32 %v28, %v129
  %v142 = vadd.f32 %v29, %v132
  %v143 = vadd.f32 %v30, %v134
  %v144 = vadd.f32 %v31, %v137
  %vm145 = vcmask 261120
  %146 = vst.msk [vmem:[#allocation2] sm:$0xff] %vm145, %v140
  %147 = vst.msk [vmem:[#allocation2 + $0x8] sm:$0xff] %vm145, %v141
  %148 = vst.msk [vmem:[#allocation2 + $0x10] sm:$0xff] %vm145, %v142
  %149 = vst.msk [vmem:[#allocation2 + $0x18] sm:$0xff] %vm145, %v143
  %150 = vst.msk [vmem:[#allocation2 + $0x20] sm:$0xff] %vm145, %v144
  // Predicated region
  $region22: #{vit_forward.16} parent=0 // pred_check
    %p151 = pneg %p17
  $region23: #{vit_forward.16} parent=0 // pred_check_branch
    %153 = sbr.rel (%p151) target = $region25
  $region24: #{vit_forward.16} parent=0 // pred_region
    %v154 = vld [vmem:[#allocation2] sm:$0xff]
    %v155 = vld [vmem:[#allocation2 + $0x8] sm:$0xff]
    %v156 = vld [vmem:[#allocation2 + $0x10] sm:$0xff]
    %v157 = vld [vmem:[#allocation2 + $0x18] sm:$0xff]
    %v158 = vld [vmem:[#allocation2 + $0x20] sm:$0xff]
    %v159 = vld [vmem:[%s2] sm:$0x1]
    %v161 = vperm.slane %v159, 0
    %v163 = vadd.f32 %v154, %v161
    %v164 = vadd.f32 %v155, %v161
    %v165 = vadd.f32 %v156, %v161
    %v166 = vadd.f32 %v157, %v161
    %v167 = vadd.f32 %v158, %v161
    %v168 = vld [vmem:[%s3] sm:$0xff]
    %v169 = vld [vmem:[%s3 + $0x8] sm:$0xff]
    %v170 = vld [vmem:[%s3 + $0x10] sm:$0xff]
    %v171 = vld [vmem:[%s3 + $0x18] sm:$0xff]
    %v172 = vld [vmem:[%s3 + $0x20] sm:$0xff]
    %v173 = vadd.f32 %v163, %v168
    %v174 = vadd.f32 %v164, %v169
    %v175 = vadd.f32 %v165, %v170
    %v176 = vadd.f32 %v166, %v171
    %v177 = vadd.f32 %v167, %v172
    %178 = vst.msk [vmem:[%s4] sm:$0xff] %vm145, %v173
    %179 = vst.msk [vmem:[%s4 + $0x8] sm:$0xff] %vm145, %v174
    %180 = vst.msk [vmem:[%s4 + $0x10] sm:$0xff] %vm145, %v175
    %181 = vst.msk [vmem:[%s4 + $0x18] sm:$0xff] %vm145, %v176
    %182 = vst.msk [vmem:[%s4 + $0x20] sm:$0xff] %vm145, %v177
  $region25: #{vit_forward.16} parent=0 // pred_fallthru
    _
  // Predicated region
  $region26: #{vit_forward.16} parent=0 // pred_check
    _
  $region27: #{vit_forward.16} parent=0 // pred_check_branch
    %184 = sbr.rel (0) target = $region29
  $region28: #{vit_forward.16} parent=0 // pred_region
    _
  $region29: #{vit_forward.16} parent=0 // pred_fallthru
    _
  // Predicated region
  $region30: #{vit_forward.16} parent=0 // pred_check
    _
  $region31: #{vit_forward.16} parent=0 // pred_check_branch
    %186 = sbr.rel (0) target = $region33
  $region32: #{vit_forward.16} parent=0 // pred_region
    _
  $region33: #{vit_forward.16} parent=0 // pred_fallthru
    _

</llo_original>
